<compile_context>
chip_gen: v6e
topology: v6e:2x2x1
jax: 0.10.0
libtpu: 0.0.40
codegen_flags: <defaults>
</compile_context>

<pallas_src>
import functools

import jax
import jax.numpy as jnp
import numpy as np
from jax.experimental import pallas as pl
from jax.experimental.pallas import tpu as pltpu

NEG_BIG = -1e30     # f32-safe "minus infinity" for masked scores
NEG_CLAMP = -5e29   # clamp for the running max so all-masked rows give p == 0


# ---------------------------------------------------------------------------
# Kernel A: per-node projections (one row block per grid step).
#   z      = x + (1-y)*emb0 + y*emb1
#   zg     = (1-y)*(z@Ws0+bs0) + y*(z@Ws1+bs1)      (fused ws_cat matmul)
#   feat   = zg @ Wgat                              [TB, H*D] bf16 (all heads)
#   scores = zg @ Wa                                [TB, 2H]  (er || el)
# Wa = Wgat @ block_diag(attn_r, attn_l) is folded at trace time.
# ---------------------------------------------------------------------------
def _project_kernel(x_ref, y_ref, emb_ref, ws_ref, bs_ref, wgat_ref, wa_ref,
                    feat_ref, scores_ref, *, hidden_dim):
    x = x_ref[...]                                   # [TB, Din]
    y = y_ref[...]                                   # [TB, 1]
    emb0 = emb_ref[0:1, :]                           # [1, Din]
    emb1 = emb_ref[1:2, :]
    z = x + (1.0 - y) * emb0 + y * emb1

    zz = jnp.dot(z, ws_ref[...], preferred_element_type=jnp.float32) + bs_ref[...]
    zg = (1.0 - y) * zz[:, :hidden_dim] + y * zz[:, hidden_dim:]      # [TB, D]

    feat = jnp.dot(zg, wgat_ref[...], preferred_element_type=jnp.float32)
    feat_ref[...] = feat.astype(feat_ref.dtype)                       # bf16 stream
    scores_ref[...] = jnp.dot(zg, wa_ref[...],
                              preferred_element_type=jnp.float32)     # [TB, 2H]


# ---------------------------------------------------------------------------
# Kernel B: compacted block-sparse masked attention + head mean + ELU + gated
# dst projection.  Grid = (dst blocks [parallel], nonzero src blocks
# [arbitrary]).  The src-block ids come from a scalar-prefetched column table;
# steps beyond count[i] repeat the previous block index (no extra DMA) and are
# skipped by pl.when.  Online softmax: per-head running max m, running sum l
# and accumulator acc live in VMEM scratch; init at k==0, finalize at k==last.
# ---------------------------------------------------------------------------
def _attn_kernel(cnt_ref, cols_ref,            # scalar prefetch: [nI], [nI*maxK]
                 y_ref, er_ref, elT_ref, feat_ref, adj_ref, wd_ref, bd_ref,
                 out_ref, m_sc, l_sc, acc_sc, *, num_heads, hidden_dim):
    i = pl.program_id(0)
    k = pl.program_id(1)

    @pl.when(k == 0)
    def _init():
        m_sc[...] = jnp.full_like(m_sc, NEG_BIG)
        l_sc[...] = jnp.zeros_like(l_sc)
        acc_sc[...] = jnp.zeros_like(acc_sc)

    # Only the first count[i] steps carry a real (nonzero) src block.
    @pl.when(k < cnt_ref[i])
    def _tile():
        mask = adj_ref[...] > 0                        # [TM, TS] bool (int8 src)
        feat = feat_ref[...]                           # [TS, H*D] bf16
        er = er_ref[...]                               # [TM, H]   dst terms
        elT = elT_ref[...]                             # [H, TS]   src terms
        m_all = m_sc[...]
        l_all = l_sc[...]
        acc_all = acc_sc[...]

        m_cols, l_cols, acc_cols = [], [], []
        for h in range(num_heads):                     # static unroll (H small)
            sl = slice(h * hidden_dim, (h + 1) * hidden_dim)
            e = er[:, h:h + 1] + elT[h:h + 1, :]       # [TM, TS]
            e = jnp.where(e > 0, e, 0.2 * e)           # leaky_relu(0.2)
            e = jnp.where(mask, e, NEG_BIG)
            m_prev = m_all[:, h:h + 1]
            m_new = jnp.maximum(m_prev, jnp.max(e, axis=-1, keepdims=True))
            # Clamp so rows with no edges in this tile still give exp(...) = 0.
            m_new = jnp.maximum(m_new, NEG_CLAMP)
            corr = jnp.exp(m_prev - m_new)
            p = jnp.exp(e - m_new)                     # masked entries underflow to 0
            l_cols.append(corr * l_all[:, h:h + 1]
                          + jnp.sum(p, axis=-1, keepdims=True))
            acc_cols.append(corr * acc_all[:, sl]
                            + jnp.dot(p.astype(feat.dtype), feat[:, sl],
                                      preferred_element_type=jnp.float32))
            m_cols.append(m_new)
        # One full-width store per scratch buffer per tile (no per-head
        # narrow masked stores).
        m_sc[...] = jnp.concatenate(m_cols, axis=-1)
        l_sc[...] = jnp.concatenate(l_cols, axis=-1)
        acc_sc[...] = jnp.concatenate(acc_cols, axis=-1)

    @pl.when(k == pl.num_programs(1) - 1)
    def _finalize():
        y = y_ref[...]                                 # [TM, 1]
        l_all = l_sc[...]
        acc_all = acc_sc[...]
        hsum = None
        for h in range(num_heads):
            sl = slice(h * hidden_dim, (h + 1) * hidden_dim)
            inv = pl.reciprocal(jnp.maximum(l_all[:, h:h + 1], 1e-9),
                                approx=True)
            c = acc_all[:, sl] * inv                   # zero in-degree -> 0
            hsum = c if hsum is None else hsum + c
        hmean = hsum * (1.0 / num_heads)
        hmean = jnp.where(hmean > 0, hmean, jnp.exp(hmean) - 1.0)      # ELU
        hd = jnp.dot(hmean, wd_ref[...],
                     preferred_element_type=jnp.float32) + bd_ref[...]  # [TM,2D]
        res = (1.0 - y) * hd[:, :hidden_dim] + y * hd[:, hidden_dim:]
        # lane-dense (128-wide) unmasked store; wrapper slices back to hidden.
        pad = jnp.zeros((res.shape[0], out_ref.shape[-1] - hidden_dim),
                        jnp.float32)
        out_ref[...] = jnp.concatenate([res, pad], axis=-1)


# ---------------------------------------------------------------------------
# Graph preparation (O(N^2) work, hoisted so it can be amortized across calls).
# Requires a *concrete* adjacency (graph structure), as in DGL.
# ---------------------------------------------------------------------------
def prepare_graph(adj, tm, ts):
    adj_np = np.asarray(adj)
    N = adj_np.shape[0]
    n_i, n_k = N // tm, N // ts
    adj_bin = adj_np > 0
    nz = adj_bin.reshape(n_i, tm, n_k, ts).any(axis=(1, 3))            # [nI,nK]
    counts = nz.sum(axis=1).astype(np.int32)                           # [nI]
    max_nnz = max(int(counts.max()) if counts.size else 0, 1)
    cols = np.zeros((n_i, max_nnz), np.int32)
    for i in range(n_i):
        idx = np.nonzero(nz[i])[0].astype(np.int32)
        if idx.size:
            cols[i, :idx.size] = idx
            cols[i, idx.size:] = idx[-1]   # pad with last id -> pipeliner skips re-DMA
    return {
        "adj_i8": jnp.asarray(adj_bin.astype(np.int8)),
        "counts": jnp.asarray(counts),
        "cols": jnp.asarray(cols.reshape(-1)),   # flat 1-D SMEM table
        "max_nnz": max_nnz,
        "nnz_blocks": int(counts.sum()),
        "n_i": n_i,
        "n_k": n_k,
    }


# ---------------------------------------------------------------------------
# Wrapper
# ---------------------------------------------------------------------------
def lexgat_forward(x, y, adj, params, *, tb=1024, tm=256, ts=512, graph=None):
    N, in_dim = x.shape
    hidden = params["ws0"].shape[1]
    H = params["attn_l"].shape[0]
    HD = H * hidden

    tb = min(tb, N)
    tm = min(tm, N)
    ts = min(ts, N)
    assert N % tb == 0 and N % tm == 0 and N % ts == 0, "N must tile evenly"
    assert tb % 8 == 0 or tb == N
    assert tm % 32 == 0 or tm == N          # int8 adjacency sublane packing
    assert ts % 128 == 0 or ts == N

    # ---- one-time weight prep (trace-time, outside the kernels) ----
    ws_cat = jnp.concatenate([params["ws0"], params["ws1"]], axis=1)   # [Din,2D]
    bs_cat = jnp.concatenate([params["bs0"], params["bs1"]], axis=1)   # [1,2D]
    wd_cat = jnp.concatenate([params["wd0"], params["wd1"]], axis=1)   # [D,2D]
    bd_cat = jnp.concatenate([params["bd0"], params["bd1"]], axis=1)   # [1,2D]
    # Fold the (block-diagonal) attention vectors directly into the GAT weight:
    # scores = zg @ (Wgat @ a_cat) == (zg @ Wgat) @ a_cat   (associativity).
    wgat_hd = params["wgat"].reshape(hidden, H, hidden)
    wa_r = jnp.einsum("ihd,hd->ih", wgat_hd, params["attn_r"])         # [D, H]
    wa_l = jnp.einsum("ihd,hd->ih", wgat_hd, params["attn_l"])         # [D, H]
    wa = jnp.concatenate([wa_r, wa_l], axis=1)                         # [D, 2H]

    # ---- Kernel A: projections + score terms ----
    feat_all, scores = pl.pallas_call(
        functools.partial(_project_kernel, hidden_dim=hidden),
        grid=(N // tb,),
        in_specs=[
            pl.BlockSpec((tb, in_dim), lambda i: (i, 0)),          # x
            pl.BlockSpec((tb, 1), lambda i: (i, 0)),               # y
            pl.BlockSpec((3, in_dim), lambda i: (0, 0)),           # emb
            pl.BlockSpec((in_dim, 2 * hidden), lambda i: (0, 0)),  # ws_cat
            pl.BlockSpec((1, 2 * hidden), lambda i: (0, 0)),       # bs_cat
            pl.BlockSpec((hidden, HD), lambda i: (0, 0)),          # wgat
            pl.BlockSpec((hidden, 2 * H), lambda i: (0, 0)),       # wa (folded)
        ],
        out_specs=[
            pl.BlockSpec((tb, HD), lambda i: (i, 0)),              # feat (bf16)
            pl.BlockSpec((tb, 2 * H), lambda i: (i, 0)),           # scores
        ],
        out_shape=[
            jax.ShapeDtypeStruct((N, HD), jnp.bfloat16),
            jax.ShapeDtypeStruct((N, 2 * H), jnp.float32),
        ],
        compiler_params=pltpu.CompilerParams(
            dimension_semantics=("parallel",),
            vmem_limit_bytes=32 * 1024 * 1024),
    )(x, y, params["emb"], ws_cat, bs_cat, params["wgat"], wa)

    er = scores[:, :H]                       # [N, H]  dst-side score term
    # Tiny [N,H] transpose kept in XLA (avoids a narrow in-kernel transpose).
    el_t = jnp.transpose(scores[:, H:])      # [H, N]  src-side term (pre-transposed)

    # ---- block-sparse adjacency structure (compacted src-block lists) ----
    if graph is None:
        graph = prepare_graph(adj, tm, ts)
    adj_i8, counts, cols = graph["adj_i8"], graph["counts"], graph["cols"]
    max_nnz, n_i = graph["max_nnz"], graph["n_i"]
    nnz_blocks = graph["nnz_blocks"]
    cols_list = [cols]  # keep closure simple

    out_pad = max(128, ((hidden + 127) // 128) * 128)

    cost = pl.CostEstimate(
        flops=int(2 * nnz_blocks * tm * ts * HD + 2 * N * hidden * 2 * hidden),
        transcendentals=int(nnz_blocks * tm * ts * H),
        bytes_accessed=int(nnz_blocks * (tm * ts + ts * HD * 2)
                           + N * out_pad * 4))

    def _src_col(i, k, cnt, cc):
        return cc[i * max_nnz + k]

    out = pl.pallas_call(
        functools.partial(_attn_kernel, num_heads=H, hidden_dim=hidden),
        grid_spec=pltpu.PrefetchScalarGridSpec(
            num_scalar_prefetch=2,
            grid=(n_i, max_nnz),
            in_specs=[
                pl.BlockSpec((tm, 1), lambda i, k, cnt, cc: (i, 0)),    # y (dst)
                pl.BlockSpec((tm, H), lambda i, k, cnt, cc: (i, 0)),    # er (dst)
                pl.BlockSpec((H, ts),
                             lambda i, k, cnt, cc: (0, _src_col(i, k, cnt, cc))),
                pl.BlockSpec((ts, HD),
                             lambda i, k, cnt, cc: (_src_col(i, k, cnt, cc), 0)),
                pl.BlockSpec((tm, ts),
                             lambda i, k, cnt, cc: (i, _src_col(i, k, cnt, cc))),
                pl.BlockSpec((hidden, 2 * hidden), lambda i, k, cnt, cc: (0, 0)),
                pl.BlockSpec((1, 2 * hidden), lambda i, k, cnt, cc: (0, 0)),
            ],
            out_specs=pl.BlockSpec((tm, out_pad), lambda i, k, cnt, cc: (i, 0)),
            scratch_shapes=[
                pltpu.VMEM((tm, H), jnp.float32),    # running max per head
                pltpu.VMEM((tm, H), jnp.float32),    # running sum per head
                pltpu.VMEM((tm, HD), jnp.float32),   # per-head accumulators
            ],
        ),
        out_shape=jax.ShapeDtypeStruct((N, out_pad), jnp.float32),
        compiler_params=pltpu.CompilerParams(
            dimension_semantics=("parallel", "arbitrary"),
            vmem_limit_bytes=32 * 1024 * 1024),
        cost_estimate=cost,
    )(counts, cols_list[0], y, er, el_t, feat_all, adj_i8, wd_cat, bd_cat)

    return out[:, :hidden]


# ---------------------------------------------------------------------------
# Pure-JAX reference mirroring the PyTorch forward semantics.
# ---------------------------------------------------------------------------
def lexgat_ref(x, y, adj, params):
    hidden = params["ws0"].shape[1]
    num_heads = params["attn_l"].shape[0]
    emb0, emb1 = params["emb"][0:1, :], params["emb"][1:2, :]
    z = x + (1.0 - y) * emb0 + y * emb1
    z0 = z @ params["ws0"] + params["bs0"]
    z1 = z @ params["ws1"] + params["bs1"]
    zg = (1.0 - y) * z0 + y * z1
    acc = jnp.zeros_like(zg)
    for h in range(num_heads):
        w_h = params["wgat"][:, h * hidden:(h + 1) * hidden]
        feat = zg @ w_h
        er = jnp.sum(feat * params["attn_r"][h:h + 1, :], axis=-1, keepdims=True)
        el = jnp.sum(feat * params["attn_l"][h:h + 1, :], axis=-1, keepdims=True)
        e = er + el.T
        e = jnp.where(e > 0, e, 0.2 * e)
        e = jnp.where(adj > 0, e, NEG_BIG)
        m = jnp.max(e, axis=-1, keepdims=True)
        p = jnp.exp(e - m) * adj
        s = jnp.sum(p, axis=-1, keepdims=True)
        alpha = p / jnp.maximum(s, 1e-9)
        acc = acc + alpha @ feat
    hmean = acc / float(num_heads)
    hmean = jnp.where(hmean > 0, hmean, jnp.exp(hmean) - 1.0)
    h0 = hmean @ params["wd0"] + params["bd0"]
    h1 = hmean @ params["wd1"] + params["bd1"]
    return (1.0 - y) * h0 + y * h1


if __name__ == "__main__":
    N, in_dim, hidden, num_heads = 256, 16, 32, 4
    key = jax.random.PRNGKey(0)
    ks = jax.random.split(key, 16)

    x = jax.random.normal(ks[0], (N, in_dim), jnp.float32)
    y = jax.random.uniform(ks[1], (N, 1), jnp.float32)              # label probs
    adj = (jax.random.uniform(ks[2], (N, N)) < 0.05).astype(jnp.float32)
    adj = adj.at[0:4, :].set(0.0)          # a few zero-in-degree dst rows
    adj = adj.at[128:, 0:128].set(0.0)     # an all-empty (dst,src) block -> skipped

    s = 0.2  # init scale
    emb = jax.random.normal(ks[3], (3, in_dim), jnp.float32) * s
    emb = emb.at[2].set(0.0)  # padding_idx=2 (unused by this forward)
    params = {
        "emb": emb,
        "ws0": jax.random.normal(ks[4], (in_dim, hidden), jnp.float32) * s,
        "bs0": jax.random.normal(ks[5], (1, hidden), jnp.float32) * s,
        "ws1": jax.random.normal(ks[6], (in_dim, hidden), jnp.float32) * s,
        "bs1": jax.random.normal(ks[7], (1, hidden), jnp.float32) * s,
        "wgat": jax.random.normal(ks[8], (hidden, num_heads * hidden),
                                  jnp.float32) * s,
        "attn_l": jax.random.normal(ks[9], (num_heads, hidden), jnp.float32) * s,
        "attn_r": jax.random.normal(ks[10], (num_heads, hidden), jnp.float32) * s,
        "wd0": jax.random.normal(ks[11], (hidden, hidden), jnp.float32) * s,
        "bd0": jax.random.normal(ks[12], (1, hidden), jnp.float32) * s,
        "wd1": jax.random.normal(ks[13], (hidden, hidden), jnp.float32) * s,
        "bd1": jax.random.normal(ks[14], (1, hidden), jnp.float32) * s,
    }

    # Small tiles for the tiny demo graph so the compaction path and >1
    # parallel dst block (v7x 2-TC balance) are exercised; production defaults
    # are tb=1024, tm=256, ts=512.
    out = lexgat_forward(x, y, adj, params, tb=256, tm=128, ts=128)
    jax.block_until_ready(out)

    ref = lexgat_ref(x, y, adj, params)
    # bf16 feat streaming + approx reciprocal -> slightly looser tolerance.
    np.testing.assert_allclose(np.asarray(out), np.asarray(ref),
                               rtol=2e-2, atol=2e-2)
    assert out.shape == (N, hidden)
    print("KERNEL_OK")
</pallas_src>

<mosaic_0001>
module attributes {stable_mosaic.version = 11 : i64} {
  func.func @_project_kernel(%arg0: i32, %arg1: memref<256x16xf32, #tpu.memory_space<vmem>>, %arg2: memref<256x1xf32, #tpu.memory_space<vmem>>, %arg3: memref<3x16xf32, #tpu.memory_space<vmem>>, %arg4: memref<16x64xf32, #tpu.memory_space<vmem>>, %arg5: memref<1x64xf32, #tpu.memory_space<vmem>>, %arg6: memref<32x128xf32, #tpu.memory_space<vmem>>, %arg7: memref<32x8xf32, #tpu.memory_space<vmem>>, %arg8: memref<256x128xbf16, #tpu.memory_space<vmem>>, %arg9: memref<256x8xf32, #tpu.memory_space<vmem>>) attributes {dimension_semantics = [#tpu.dimension_semantics<parallel>], iteration_bounds = array<i64: 1>, scalar_prefetch = 0 : i64, scratch_operands = 0 : i64, tpu.core_type = #tpu.core_type<tc>, window_params = [{transform_indices = @transform_0, window_bounds = array<i64: 256, 16>}, {transform_indices = @transform_1, window_bounds = array<i64: 256, 1>}, {pipeline_mode = #tpu.pipeline_mode<synchronous>, transform_indices = @transform_2, window_bounds = array<i64: 3, 16>}, {pipeline_mode = #tpu.pipeline_mode<synchronous>, transform_indices = @transform_3, window_bounds = array<i64: 16, 64>}, {pipeline_mode = #tpu.pipeline_mode<synchronous>, transform_indices = @transform_4, window_bounds = array<i64: 1, 64>}, {pipeline_mode = #tpu.pipeline_mode<synchronous>, transform_indices = @transform_5, window_bounds = array<i64: 32, 128>}, {pipeline_mode = #tpu.pipeline_mode<synchronous>, transform_indices = @transform_6, window_bounds = array<i64: 32, 8>}, {transform_indices = @transform_7, window_bounds = array<i64: 256, 128>}, {transform_indices = @transform_8, window_bounds = array<i64: 256, 8>}]} {
    %c0 = arith.constant 0 : index
    %c0_0 = arith.constant 0 : index
    %0 = vector.load %arg1[%c0, %c0_0] : memref<256x16xf32, #tpu.memory_space<vmem>>, vector<256x16xf32>
    %c0_1 = arith.constant 0 : index
    %c0_2 = arith.constant 0 : index
    %1 = vector.load %arg2[%c0_1, %c0_2] : memref<256x1xf32, #tpu.memory_space<vmem>>, vector<256x1xf32>
    %c0_3 = arith.constant 0 : index
    %c0_4 = arith.constant 0 : index
    %2 = vector.load %arg3[%c0_3, %c0_4] : memref<3x16xf32, #tpu.memory_space<vmem>>, vector<1x16xf32>
    %c1 = arith.constant 1 : index
    %c0_5 = arith.constant 0 : index
    %3 = vector.load %arg3[%c1, %c0_5] : memref<3x16xf32, #tpu.memory_space<vmem>>, vector<1x16xf32>
    %cst = arith.constant 1.000000e+00 : f32
    %4 = vector.broadcast %cst : f32 to vector<256x1xf32>
    %5 = arith.subf %4, %1 : vector<256x1xf32>
    %6 = vector.broadcast %5 : vector<256x1xf32> to vector<256x16xf32>
    %7 = vector.broadcast %2 : vector<1x16xf32> to vector<256x16xf32>
    %8 = arith.mulf %6, %7 : vector<256x16xf32>
    %9 = arith.addf %0, %8 : vector<256x16xf32>
    %10 = vector.broadcast %1 : vector<256x1xf32> to vector<256x16xf32>
    %11 = vector.broadcast %3 : vector<1x16xf32> to vector<256x16xf32>
    %12 = arith.mulf %10, %11 : vector<256x16xf32>
    %13 = arith.addf %9, %12 : vector<256x16xf32>
    %c0_6 = arith.constant 0 : index
    %c0_7 = arith.constant 0 : index
    %14 = vector.load %arg4[%c0_6, %c0_7] : memref<16x64xf32, #tpu.memory_space<vmem>>, vector<16x64xf32>
    %cst_8 = arith.constant dense<0.000000e+00> : vector<256x64xf32>
    %15 = tpu.matmul %13, %14, %cst_8 {dimension_numbers = #tpu.dot_dimension_numbers<[1], [0], [0], [1], [0, 0, 1, 1], [], []>} : vector<256x16xf32>, vector<16x64xf32>, vector<256x64xf32> -> vector<256x64xf32>
    %c0_9 = arith.constant 0 : index
    %c0_10 = arith.constant 0 : index
    %16 = vector.load %arg5[%c0_9, %c0_10] : memref<1x64xf32, #tpu.memory_space<vmem>>, vector<1x64xf32>
    %17 = vector.broadcast %16 : vector<1x64xf32> to vector<256x64xf32>
    %18 = arith.addf %15, %17 : vector<256x64xf32>
    %cst_11 = arith.constant 1.000000e+00 : f32
    %19 = vector.broadcast %cst_11 : f32 to vector<256x1xf32>
    %20 = arith.subf %19, %1 : vector<256x1xf32>
    %21 = vector.extract_strided_slice %18 {offsets = [0, 0], sizes = [256, 32], strides = [1, 1]} : vector<256x64xf32> to vector<256x32xf32>
    %22 = vector.broadcast %20 : vector<256x1xf32> to vector<256x32xf32>
    %23 = arith.mulf %22, %21 : vector<256x32xf32>
    %24 = vector.extract_strided_slice %18 {offsets = [0, 32], sizes = [256, 32], strides = [1, 1]} : vector<256x64xf32> to vector<256x32xf32>
    %25 = vector.broadcast %1 : vector<256x1xf32> to vector<256x32xf32>
    %26 = arith.mulf %25, %24 : vector<256x32xf32>
    %27 = arith.addf %23, %26 : vector<256x32xf32>
    %c0_12 = arith.constant 0 : index
    %c0_13 = arith.constant 0 : index
    %28 = vector.load %arg6[%c0_12, %c0_13] : memref<32x128xf32, #tpu.memory_space<vmem>>, vector<32x128xf32>
    %cst_14 = arith.constant dense<0.000000e+00> : vector<256x128xf32>
    %29 = tpu.matmul %27, %28, %cst_14 {dimension_numbers = #tpu.dot_dimension_numbers<[1], [0], [0], [1], [0, 0, 1, 1], [], []>} : vector<256x32xf32>, vector<32x128xf32>, vector<256x128xf32> -> vector<256x128xf32>
    %30 = arith.truncf %29 : vector<256x128xf32> to vector<256x128xbf16>
    %c0_15 = arith.constant 0 : index
    %c0_16 = arith.constant 0 : index
    %31 = vector.load %arg8[%c0_15, %c0_16] : memref<256x128xbf16, #tpu.memory_space<vmem>>, vector<256x128xbf16>
    tpu.vector_store %arg8[%c0_15, %c0_16], %30 {strides = array<i32>} : memref<256x128xbf16, #tpu.memory_space<vmem>>, vector<256x128xbf16>,
    %c0_17 = arith.constant 0 : index
    %c0_18 = arith.constant 0 : index
    %32 = vector.load %arg7[%c0_17, %c0_18] : memref<32x8xf32, #tpu.memory_space<vmem>>, vector<32x8xf32>
    %cst_19 = arith.constant dense<0.000000e+00> : vector<256x8xf32>
    %33 = tpu.matmul %27, %32, %cst_19 {dimension_numbers = #tpu.dot_dimension_numbers<[1], [0], [0], [1], [0, 0, 1, 1], [], []>} : vector<256x32xf32>, vector<32x8xf32>, vector<256x8xf32> -> vector<256x8xf32>
    %c0_20 = arith.constant 0 : index
    %c0_21 = arith.constant 0 : index
    %34 = vector.load %arg9[%c0_20, %c0_21] : memref<256x8xf32, #tpu.memory_space<vmem>>, vector<256x8xf32>
    tpu.vector_store %arg9[%c0_20, %c0_21], %33 {strides = array<i32>} : memref<256x8xf32, #tpu.memory_space<vmem>>, vector<256x8xf32>,
    return
  }
  func.func @transform_0(%arg0: i32) -> (i32, i32) {
    %c0_i32 = arith.constant 0 : i32
    %c0_i32_0 = arith.constant 0 : i32
    return %arg0, %c0_i32 : i32, i32
  }
  func.func @transform_1(%arg0: i32) -> (i32, i32) {
    %c0_i32 = arith.constant 0 : i32
    %c0_i32_0 = arith.constant 0 : i32
    return %arg0, %c0_i32 : i32, i32
  }
  func.func @transform_2(%arg0: i32) -> (i32, i32) {
    %c0_i32 = arith.constant 0 : i32
    %c0_i32_0 = arith.constant 0 : i32
    %c0_i32_1 = arith.constant 0 : i32
    return %c0_i32, %c0_i32_0 : i32, i32
  }
  func.func @transform_3(%arg0: i32) -> (i32, i32) {
    %c0_i32 = arith.constant 0 : i32
    %c0_i32_0 = arith.constant 0 : i32
    %c0_i32_1 = arith.constant 0 : i32
    return %c0_i32, %c0_i32_0 : i32, i32
  }
  func.func @transform_4(%arg0: i32) -> (i32, i32) {
    %c0_i32 = arith.constant 0 : i32
    %c0_i32_0 = arith.constant 0 : i32
    %c0_i32_1 = arith.constant 0 : i32
    return %c0_i32, %c0_i32_0 : i32, i32
  }
  func.func @transform_5(%arg0: i32) -> (i32, i32) {
    %c0_i32 = arith.constant 0 : i32
    %c0_i32_0 = arith.constant 0 : i32
    %c0_i32_1 = arith.constant 0 : i32
    return %c0_i32, %c0_i32_0 : i32, i32
  }
  func.func @transform_6(%arg0: i32) -> (i32, i32) {
    %c0_i32 = arith.constant 0 : i32
    %c0_i32_0 = arith.constant 0 : i32
    %c0_i32_1 = arith.constant 0 : i32
    return %c0_i32, %c0_i32_0 : i32, i32
  }
  func.func @transform_7(%arg0: i32) -> (i32, i32) {
    %c0_i32 = arith.constant 0 : i32
    %c0_i32_0 = arith.constant 0 : i32
    return %arg0, %c0_i32 : i32, i32
  }
  func.func @transform_8(%arg0: i32) -> (i32, i32) {
    %c0_i32 = arith.constant 0 : i32
    %c0_i32_0 = arith.constant 0 : i32
    return %arg0, %c0_i32 : i32, i32
  }
}

</mosaic_0001>

<llo_original>
// kernel: tpu_custom_call.1
$region0: #{tpu_custom_call.1}
  #allocation0 [shape = 'u32[]', space=smem, size = 0x4, offset = 0x4, fixed_abs, tag = 'smem constant byte address 0x4 - core index']
  #allocation1 [shape = 'u32[144,128]{1,0:T(1,128)}', space=vmem, size = 0x12000, scoped, tag = 'internal scratch']
  %s0 = inlined_call_operand.vmem [shape: f32[256,16], index: 0, kind: input, shape index: {}]
  %s1 = inlined_call_operand.vmem [shape: f32[256,1], index: 1, kind: input, shape index: {}]
  %s2 = inlined_call_operand.vmem [shape: f32[3,16], index: 2, kind: input, shape index: {}]
  %s3 = inlined_call_operand.vmem [shape: f32[16,64], index: 3, kind: input, shape index: {}]
  %s4 = inlined_call_operand.vmem [shape: f32[1,64], index: 4, kind: input, shape index: {}]
  %s5 = inlined_call_operand.vmem [shape: f32[32,128], index: 5, kind: input, shape index: {}]
  %s6 = inlined_call_operand.vmem [shape: f32[32,8], index: 6, kind: input, shape index: {}]
  %s7 = inlined_call_operand.hbm [shape: bf16[256,128], index: 7, kind: output, shape index: {0}]
  %s8 = inlined_call_operand.vmem [shape: f32[256,8], index: 8, kind: output, shape index: {1}]
  %9 = xla_tuple %s7, %s8
  %s10 = sld [smem:[#allocation0]]
  $region46: #{tpu_custom_call.1} parent=0
    _
  %s12 = ssub.s32 1, %s10
  %s13 = scalar_select 0, %s12, %s10
  $region1: #{tpu_custom_call.1} parent=0
    #allocation2 [shape = 'u8[65536]{0}', space=vmem, size = 0x10000, scoped, tag = 'output window, operand 0, single buffered']
    #allocation3 [shape = 's32[1]{0}', space=sflag, size = 0x4, scoped, tag = 'scoped memory for tpu_custom_call.1']
    %14 = vsyncpa [#allocation3], 0
    // Predicated region
    $region2: #{tpu_custom_call.1} parent=1 // pred_check
      _
    $region3: #{tpu_custom_call.1} parent=1 // pred_check_branch
      %16 = sbr.rel (0) target = $region5
    $region4: #{tpu_custom_call.1} parent=1 // pred_region
      _
    $region5: #{tpu_custom_call.1} parent=1 // pred_fallthru
      _
    // Predicated region
    $region6: #{tpu_custom_call.1} parent=1 // pred_check
      _
    $region7: #{tpu_custom_call.1} parent=1 // pred_check_branch
      %18 = sbr.rel (0) target = $region9
    $region8: #{tpu_custom_call.1} parent=1 // pred_region
      _
    $region9: #{tpu_custom_call.1} parent=1 // pred_fallthru
      _
    // Predicated region
    $region10: #{tpu_custom_call.1} parent=1 // pred_check
      _
    $region11: #{tpu_custom_call.1} parent=1 // pred_check_branch
      %20 = sbr.rel (0) target = $region13
    $region12: #{tpu_custom_call.1} parent=1 // pred_region
      _
    $region13: #{tpu_custom_call.1} parent=1 // pred_fallthru
      _
    // Predicated region
    $region14: #{tpu_custom_call.1} parent=1 // pred_check
      _
    $region15: #{tpu_custom_call.1} parent=1 // pred_check_branch
      %22 = sbr.rel (0) target = $region17
    $region16: #{tpu_custom_call.1} parent=1 // pred_region
      _
    $region17: #{tpu_custom_call.1} parent=1 // pred_fallthru
      _
    // Predicated region
    $region18: #{tpu_custom_call.1} parent=1 // pred_check
      _
    $region19: #{tpu_custom_call.1} parent=1 // pred_check_branch
      %24 = sbr.rel (0) target = $region21
    $region20: #{tpu_custom_call.1} parent=1 // pred_region
      _
    $region21: #{tpu_custom_call.1} parent=1 // pred_fallthru
      _
    // Predicated region
    $region22: #{tpu_custom_call.1} parent=1 // pred_check
      _
    $region23: #{tpu_custom_call.1} parent=1 // pred_check_branch
      %26 = sbr.rel (0) target = $region25
    $region24: #{tpu_custom_call.1} parent=1 // pred_region
      _
    $region25: #{tpu_custom_call.1} parent=1 // pred_fallthru
      _
    // Predicated region
    $region26: #{tpu_custom_call.1} parent=1 // pred_check
      _
    $region27: #{tpu_custom_call.1} parent=1 // pred_check_branch
      %28 = sbr.rel (0) target = $region29
    $region28: #{tpu_custom_call.1} parent=1 // pred_region
      _
    $region29: #{tpu_custom_call.1} parent=1 // pred_fallthru
      _
    %v29 = vld [vmem:[%s0] sm:$0xff]
    %v30 = vld [vmem:[%s0 + $0x8] sm:$0xff]
    %v31 = vld [vmem:[%s0 + $0x10] sm:$0xff]
    %v32 = vld [vmem:[%s0 + $0x18] sm:$0xff]
    %v33 = vld [vmem:[%s0 + $0x20] sm:$0xff]
    %v34 = vld [vmem:[%s0 + $0x28] sm:$0xff]
    %v35 = vld [vmem:[%s0 + $0x30] sm:$0xff]
    %v36 = vld [vmem:[%s0 + $0x38] sm:$0xff]
    %v37 = vld [vmem:[%s0 + $0x40] sm:$0xff]
    %v38 = vld [vmem:[%s0 + $0x48] sm:$0xff]
    %v39 = vld [vmem:[%s0 + $0x50] sm:$0xff]
    %v40 = vld [vmem:[%s0 + $0x58] sm:$0xff]
    %v41 = vld [vmem:[%s0 + $0x60] sm:$0xff]
    %v42 = vld [vmem:[%s0 + $0x68] sm:$0xff]
    %v43 = vld [vmem:[%s0 + $0x70] sm:$0xff]
    %v44 = vld [vmem:[%s0 + $0x78] sm:$0xff]
    %v45 = vld [vmem:[%s0 + $0x80] sm:$0xff]
    %v46 = vld [vmem:[%s0 + $0x88] sm:$0xff]
    %v47 = vld [vmem:[%s0 + $0x90] sm:$0xff]
    %v48 = vld [vmem:[%s0 + $0x98] sm:$0xff]
    %v49 = vld [vmem:[%s0 + $0xa0] sm:$0xff]
    %v50 = vld [vmem:[%s0 + $0xa8] sm:$0xff]
    %v51 = vld [vmem:[%s0 + $0xb0] sm:$0xff]
    %v52 = vld [vmem:[%s0 + $0xb8] sm:$0xff]
    %v53 = vld [vmem:[%s0 + $0xc0] sm:$0xff]
    %v54 = vld [vmem:[%s0 + $0xc8] sm:$0xff]
    %v55 = vld [vmem:[%s0 + $0xd0] sm:$0xff]
    %v56 = vld [vmem:[%s0 + $0xd8] sm:$0xff]
    %v57 = vld [vmem:[%s0 + $0xe0] sm:$0xff]
    %v58 = vld [vmem:[%s0 + $0xe8] sm:$0xff]
    %v59 = vld [vmem:[%s0 + $0xf0] sm:$0xff]
    %v60 = vld [vmem:[%s0 + $0xf8] sm:$0xff]
    %v61 = vld [vmem:[%s1] sm:$0xff]
    %v62 = vld [vmem:[%s1 + $0x8] sm:$0xff]
    %v63 = vld [vmem:[%s1 + $0x10] sm:$0xff]
    %v64 = vld [vmem:[%s1 + $0x18] sm:$0xff]
    %v65 = vld [vmem:[%s1 + $0x20] sm:$0xff]
    %v66 = vld [vmem:[%s1 + $0x28] sm:$0xff]
    %v67 = vld [vmem:[%s1 + $0x30] sm:$0xff]
    %v68 = vld [vmem:[%s1 + $0x38] sm:$0xff]
    %v69 = vld [vmem:[%s1 + $0x40] sm:$0xff]
    %v70 = vld [vmem:[%s1 + $0x48] sm:$0xff]
    %v71 = vld [vmem:[%s1 + $0x50] sm:$0xff]
    %v72 = vld [vmem:[%s1 + $0x58] sm:$0xff]
    %v73 = vld [vmem:[%s1 + $0x60] sm:$0xff]
    %v74 = vld [vmem:[%s1 + $0x68] sm:$0xff]
    %v75 = vld [vmem:[%s1 + $0x70] sm:$0xff]
    %v76 = vld [vmem:[%s1 + $0x78] sm:$0xff]
    %v77 = vld [vmem:[%s1 + $0x80] sm:$0xff]
    %v78 = vld [vmem:[%s1 + $0x88] sm:$0xff]
    %v79 = vld [vmem:[%s1 + $0x90] sm:$0xff]
    %v80 = vld [vmem:[%s1 + $0x98] sm:$0xff]
    %v81 = vld [vmem:[%s1 + $0xa0] sm:$0xff]
    %v82 = vld [vmem:[%s1 + $0xa8] sm:$0xff]
    %v83 = vld [vmem:[%s1 + $0xb0] sm:$0xff]
    %v84 = vld [vmem:[%s1 + $0xb8] sm:$0xff]
    %v85 = vld [vmem:[%s1 + $0xc0] sm:$0xff]
    %v86 = vld [vmem:[%s1 + $0xc8] sm:$0xff]
    %v87 = vld [vmem:[%s1 + $0xd0] sm:$0xff]
    %v88 = vld [vmem:[%s1 + $0xd8] sm:$0xff]
    %v89 = vld [vmem:[%s1 + $0xe0] sm:$0xff]
    %v90 = vld [vmem:[%s1 + $0xe8] sm:$0xff]
    %v91 = vld [vmem:[%s1 + $0xf0] sm:$0xff]
    %v92 = vld [vmem:[%s1 + $0xf8] sm:$0xff]
    %v93 = vld [vmem:[%s2] sm:$0x1]
    %v94 = vld [vmem:[%s2 + $0x1] sm:$0x1]
    %v95 = vsub.f32 1.0, %v61
    %v96 = vsub.f32 1.0, %v62
    %v97 = vsub.f32 1.0, %v63
    %v98 = vsub.f32 1.0, %v64
    %v99 = vsub.f32 1.0, %v65
    %v100 = vsub.f32 1.0, %v66
    %v101 = vsub.f32 1.0, %v67
    %v102 = vsub.f32 1.0, %v68
    %v103 = vsub.f32 1.0, %v69
    %v104 = vsub.f32 1.0, %v70
    %v105 = vsub.f32 1.0, %v71
    %v106 = vsub.f32 1.0, %v72
    %v107 = vsub.f32 1.0, %v73
    %v108 = vsub.f32 1.0, %v74
    %v109 = vsub.f32 1.0, %v75
    %v110 = vsub.f32 1.0, %v76
    %v111 = vsub.f32 1.0, %v77
    %v112 = vsub.f32 1.0, %v78
    %v113 = vsub.f32 1.0, %v79
    %v114 = vsub.f32 1.0, %v80
    %v115 = vsub.f32 1.0, %v81
    %v116 = vsub.f32 1.0, %v82
    %v117 = vsub.f32 1.0, %v83
    %v118 = vsub.f32 1.0, %v84
    %v119 = vsub.f32 1.0, %v85
    %v120 = vsub.f32 1.0, %v86
    %v121 = vsub.f32 1.0, %v87
    %v122 = vsub.f32 1.0, %v88
    %v123 = vsub.f32 1.0, %v89
    %v124 = vsub.f32 1.0, %v90
    %v125 = vsub.f32 1.0, %v91
    %v126 = vsub.f32 1.0, %v92
    %128 = vset.pattern.permute.xlu0 0
    %129 = vperm.xlu0 %128, %v95
    %v130 = vpop.permute.xlu0 %129
    %133 = vset.pattern.permute.xlu0 0
    %134 = vperm.xlu0 %133, %v96
    %v135 = vpop.permute.xlu0 %134
    %138 = vset.pattern.permute.xlu0 0
    %139 = vperm.xlu0 %138, %v97
    %v140 = vpop.permute.xlu0 %139
    %143 = vset.pattern.permute.xlu0 0
    %144 = vperm.xlu0 %143, %v98
    %v145 = vpop.permute.xlu0 %144
    %148 = vset.pattern.permute.xlu0 0
    %149 = vperm.xlu0 %148, %v99
    %v150 = vpop.permute.xlu0 %149
    %153 = vset.pattern.permute.xlu0 0
    %154 = vperm.xlu0 %153, %v100
    %v155 = vpop.permute.xlu0 %154
    %158 = vset.pattern.permute.xlu0 0
    %159 = vperm.xlu0 %158, %v101
    %v160 = vpop.permute.xlu0 %159
    %163 = vset.pattern.permute.xlu0 0
    %164 = vperm.xlu0 %163, %v102
    %v165 = vpop.permute.xlu0 %164
    %168 = vset.pattern.permute.xlu0 0
    %169 = vperm.xlu0 %168, %v103
    %v170 = vpop.permute.xlu0 %169
    %173 = vset.pattern.permute.xlu0 0
    %174 = vperm.xlu0 %173, %v104
    %v175 = vpop.permute.xlu0 %174
    %178 = vset.pattern.permute.xlu0 0
    %179 = vperm.xlu0 %178, %v105
    %v180 = vpop.permute.xlu0 %179
    %183 = vset.pattern.permute.xlu0 0
    %184 = vperm.xlu0 %183, %v106
    %v185 = vpop.permute.xlu0 %184
    %188 = vset.pattern.permute.xlu0 0
    %189 = vperm.xlu0 %188, %v107
    %v190 = vpop.permute.xlu0 %189
    %193 = vset.pattern.permute.xlu0 0
    %194 = vperm.xlu0 %193, %v108
    %v195 = vpop.permute.xlu0 %194
    %198 = vset.pattern.permute.xlu0 0
    %199 = vperm.xlu0 %198, %v109
    %v200 = vpop.permute.xlu0 %199
    %203 = vset.pattern.permute.xlu0 0
    %204 = vperm.xlu0 %203, %v110
    %v205 = vpop.permute.xlu0 %204
    %208 = vset.pattern.permute.xlu0 0
    %209 = vperm.xlu0 %208, %v111
    %v210 = vpop.permute.xlu0 %209
    %213 = vset.pattern.permute.xlu0 0
    %214 = vperm.xlu0 %213, %v112
    %v215 = vpop.permute.xlu0 %214
    %218 = vset.pattern.permute.xlu0 0
    %219 = vperm.xlu0 %218, %v113
    %v220 = vpop.permute.xlu0 %219
    %223 = vset.pattern.permute.xlu0 0
    %224 = vperm.xlu0 %223, %v114
    %v225 = vpop.permute.xlu0 %224
    %228 = vset.pattern.permute.xlu0 0
    %229 = vperm.xlu0 %228, %v115
    %v230 = vpop.permute.xlu0 %229
    %233 = vset.pattern.permute.xlu0 0
    %234 = vperm.xlu0 %233, %v116
    %v235 = vpop.permute.xlu0 %234
    %238 = vset.pattern.permute.xlu0 0
    %239 = vperm.xlu0 %238, %v117
    %v240 = vpop.permute.xlu0 %239
    %243 = vset.pattern.permute.xlu0 0
    %244 = vperm.xlu0 %243, %v118
    %v245 = vpop.permute.xlu0 %244
    %248 = vset.pattern.permute.xlu0 0
    %249 = vperm.xlu0 %248, %v119
    %v250 = vpop.permute.xlu0 %249
    %253 = vset.pattern.permute.xlu0 0
    %254 = vperm.xlu0 %253, %v120
    %v255 = vpop.permute.xlu0 %254
    %258 = vset.pattern.permute.xlu0 0
    %259 = vperm.xlu0 %258, %v121
    %v260 = vpop.permute.xlu0 %259
    %263 = vset.pattern.permute.xlu0 0
    %264 = vperm.xlu0 %263, %v122
    %v265 = vpop.permute.xlu0 %264
    %268 = vset.pattern.permute.xlu0 0
    %269 = vperm.xlu0 %268, %v123
    %v270 = vpop.permute.xlu0 %269
    %273 = vset.pattern.permute.xlu0 0
    %274 = vperm.xlu0 %273, %v124
    %v275 = vpop.permute.xlu0 %274
    %278 = vset.pattern.permute.xlu0 0
    %279 = vperm.xlu0 %278, %v125
    %v280 = vpop.permute.xlu0 %279
    %283 = vset.pattern.permute.xlu0 0
    %284 = vperm.xlu0 %283, %v126
    %v285 = vpop.permute.xlu0 %284
    %v287 = vlaneseq
    %v288 = vshrl.u32 %v287, 7
    %v289 = vsub.s32 0, %v288
    %v290 = vrot.slane %v93, %v289
    %v291 = vmul.f32 %v130, %v290
    %v292 = vmul.f32 %v135, %v290
    %v293 = vmul.f32 %v140, %v290
    %v294 = vmul.f32 %v145, %v290
    %v295 = vmul.f32 %v150, %v290
    %v296 = vmul.f32 %v155, %v290
    %v297 = vmul.f32 %v160, %v290
    %v298 = vmul.f32 %v165, %v290
    %v299 = vmul.f32 %v170, %v290
    %v300 = vmul.f32 %v175, %v290
    %v301 = vmul.f32 %v180, %v290
    %v302 = vmul.f32 %v185, %v290
    %v303 = vmul.f32 %v190, %v290
    %v304 = vmul.f32 %v195, %v290
    %v305 = vmul.f32 %v200, %v290
    %v306 = vmul.f32 %v205, %v290
    %v307 = vmul.f32 %v210, %v290
    %v308 = vmul.f32 %v215, %v290
    %v309 = vmul.f32 %v220, %v290
    %v310 = vmul.f32 %v225, %v290
    %v311 = vmul.f32 %v230, %v290
    %v312 = vmul.f32 %v235, %v290
    %v313 = vmul.f32 %v240, %v290
    %v314 = vmul.f32 %v245, %v290
    %v315 = vmul.f32 %v250, %v290
    %v316 = vmul.f32 %v255, %v290
    %v317 = vmul.f32 %v260, %v290
    %v318 = vmul.f32 %v265, %v290
    %v319 = vmul.f32 %v270, %v290
    %v320 = vmul.f32 %v275, %v290
    %v321 = vmul.f32 %v280, %v290
    %v322 = vmul.f32 %v285, %v290
    %v323 = vadd.f32 %v29, %v291
    %v324 = vadd.f32 %v30, %v292
    %v325 = vadd.f32 %v31, %v293
    %v326 = vadd.f32 %v32, %v294
    %v327 = vadd.f32 %v33, %v295
    %v328 = vadd.f32 %v34, %v296
    %v329 = vadd.f32 %v35, %v297
    %v330 = vadd.f32 %v36, %v298
    %v331 = vadd.f32 %v37, %v299
    %v332 = vadd.f32 %v38, %v300
    %v333 = vadd.f32 %v39, %v301
    %v334 = vadd.f32 %v40, %v302
    %v335 = vadd.f32 %v41, %v303
    %v336 = vadd.f32 %v42, %v304
    %v337 = vadd.f32 %v43, %v305
    %v338 = vadd.f32 %v44, %v306
    %v339 = vadd.f32 %v45, %v307
    %v340 = vadd.f32 %v46, %v308
    %v341 = vadd.f32 %v47, %v309
    %v342 = vadd.f32 %v48, %v310
    %v343 = vadd.f32 %v49, %v311
    %v344 = vadd.f32 %v50, %v312
    %v345 = vadd.f32 %v51, %v313
    %v346 = vadd.f32 %v52, %v314
    %v347 = vadd.f32 %v53, %v315
    %v348 = vadd.f32 %v54, %v316
    %v349 = vadd.f32 %v55, %v317
    %v350 = vadd.f32 %v56, %v318
    %v351 = vadd.f32 %v57, %v319
    %v352 = vadd.f32 %v58, %v320
    %v353 = vadd.f32 %v59, %v321
    %v354 = vadd.f32 %v60, %v322
    %356 = vset.pattern.permute.xlu0 0
    %357 = vperm.xlu0 %356, %v61
    %v358 = vpop.permute.xlu0 %357
    %361 = vset.pattern.permute.xlu0 0
    %362 = vperm.xlu0 %361, %v62
    %v363 = vpop.permute.xlu0 %362
    %366 = vset.pattern.permute.xlu0 0
    %367 = vperm.xlu0 %366, %v63
    %v368 = vpop.permute.xlu0 %367
    %371 = vset.pattern.permute.xlu0 0
    %372 = vperm.xlu0 %371, %v64
    %v373 = vpop.permute.xlu0 %372
    %376 = vset.pattern.permute.xlu0 0
    %377 = vperm.xlu0 %376, %v65
    %v378 = vpop.permute.xlu0 %377
    %381 = vset.pattern.permute.xlu0 0
    %382 = vperm.xlu0 %381, %v66
    %v383 = vpop.permute.xlu0 %382
    %386 = vset.pattern.permute.xlu0 0
    %387 = vperm.xlu0 %386, %v67
    %v388 = vpop.permute.xlu0 %387
    %391 = vset.pattern.permute.xlu0 0
    %392 = vperm.xlu0 %391, %v68
    %v393 = vpop.permute.xlu0 %392
    %396 = vset.pattern.permute.xlu0 0
    %397 = vperm.xlu0 %396, %v69
    %v398 = vpop.permute.xlu0 %397
    %401 = vset.pattern.permute.xlu0 0
    %402 = vperm.xlu0 %401, %v70
    %v403 = vpop.permute.xlu0 %402
    %406 = vset.pattern.permute.xlu0 0
    %407 = vperm.xlu0 %406, %v71
    %v408 = vpop.permute.xlu0 %407
    %411 = vset.pattern.permute.xlu0 0
    %412 = vperm.xlu0 %411, %v72
    %v413 = vpop.permute.xlu0 %412
    %416 = vset.pattern.permute.xlu0 0
    %417 = vperm.xlu0 %416, %v73
    %v418 = vpop.permute.xlu0 %417
    %421 = vset.pattern.permute.xlu0 0
    %422 = vperm.xlu0 %421, %v74
    %v423 = vpop.permute.xlu0 %422
    %426 = vset.pattern.permute.xlu0 0
    %427 = vperm.xlu0 %426, %v75
    %v428 = vpop.permute.xlu0 %427
    %431 = vset.pattern.permute.xlu0 0
    %432 = vperm.xlu0 %431, %v76
    %v433 = vpop.permute.xlu0 %432
    %436 = vset.pattern.permute.xlu0 0
    %437 = vperm.xlu0 %436, %v77
    %v438 = vpop.permute.xlu0 %437
    %441 = vset.pattern.permute.xlu0 0
    %442 = vperm.xlu0 %441, %v78
    %v443 = vpop.permute.xlu0 %442
    %446 = vset.pattern.permute.xlu0 0
    %447 = vperm.xlu0 %446, %v79
    %v448 = vpop.permute.xlu0 %447
    %451 = vset.pattern.permute.xlu0 0
    %452 = vperm.xlu0 %451, %v80
    %v453 = vpop.permute.xlu0 %452
    %456 = vset.pattern.permute.xlu0 0
    %457 = vperm.xlu0 %456, %v81
    %v458 = vpop.permute.xlu0 %457
    %461 = vset.pattern.permute.xlu0 0
    %462 = vperm.xlu0 %461, %v82
    %v463 = vpop.permute.xlu0 %462
    %466 = vset.pattern.permute.xlu0 0
    %467 = vperm.xlu0 %466, %v83
    %v468 = vpop.permute.xlu0 %467
    %471 = vset.pattern.permute.xlu0 0
    %472 = vperm.xlu0 %471, %v84
    %v473 = vpop.permute.xlu0 %472
    %476 = vset.pattern.permute.xlu0 0
    %477 = vperm.xlu0 %476, %v85
    %v478 = vpop.permute.xlu0 %477
    %481 = vset.pattern.permute.xlu0 0
    %482 = vperm.xlu0 %481, %v86
    %v483 = vpop.permute.xlu0 %482
    %486 = vset.pattern.permute.xlu0 0
    %487 = vperm.xlu0 %486, %v87
    %v488 = vpop.permute.xlu0 %487
    %491 = vset.pattern.permute.xlu0 0
    %492 = vperm.xlu0 %491, %v88
    %v493 = vpop.permute.xlu0 %492
    %496 = vset.pattern.permute.xlu0 0
    %497 = vperm.xlu0 %496, %v89
    %v498 = vpop.permute.xlu0 %497
    %501 = vset.pattern.permute.xlu0 0
    %502 = vperm.xlu0 %501, %v90
    %v503 = vpop.permute.xlu0 %502
    %506 = vset.pattern.permute.xlu0 0
    %507 = vperm.xlu0 %506, %v91
    %v508 = vpop.permute.xlu0 %507
    %511 = vset.pattern.permute.xlu0 0
    %512 = vperm.xlu0 %511, %v92
    %v513 = vpop.permute.xlu0 %512
    %v515 = vlaneseq
    %v516 = vshrl.u32 %v515, 7
    %v517 = vsub.s32 0, %v516
    %v518 = vrot.slane %v94, %v517
    %v519 = vmul.f32 %v358, %v518
    %v520 = vmul.f32 %v363, %v518
    %v521 = vmul.f32 %v368, %v518
    %v522 = vmul.f32 %v373, %v518
    %v523 = vmul.f32 %v378, %v518
    %v524 = vmul.f32 %v383, %v518
    %v525 = vmul.f32 %v388, %v518
    %v526 = vmul.f32 %v393, %v518
    %v527 = vmul.f32 %v398, %v518
    %v528 = vmul.f32 %v403, %v518
    %v529 = vmul.f32 %v408, %v518
    %v530 = vmul.f32 %v413, %v518
    %v531 = vmul.f32 %v418, %v518
    %v532 = vmul.f32 %v423, %v518
    %v533 = vmul.f32 %v428, %v518
    %v534 = vmul.f32 %v433, %v518
    %v535 = vmul.f32 %v438, %v518
    %v536 = vmul.f32 %v443, %v518
    %v537 = vmul.f32 %v448, %v518
    %v538 = vmul.f32 %v453, %v518
    %v539 = vmul.f32 %v458, %v518
    %v540 = vmul.f32 %v463, %v518
    %v541 = vmul.f32 %v468, %v518
    %v542 = vmul.f32 %v473, %v518
    %v543 = vmul.f32 %v478, %v518
    %v544 = vmul.f32 %v483, %v518
    %v545 = vmul.f32 %v488, %v518
    %v546 = vmul.f32 %v493, %v518
    %v547 = vmul.f32 %v498, %v518
    %v548 = vmul.f32 %v503, %v518
    %v549 = vmul.f32 %v508, %v518
    %v550 = vmul.f32 %v513, %v518
    %v551 = vadd.f32 %v323, %v519
    %v552 = vadd.f32 %v324, %v520
    %v553 = vadd.f32 %v325, %v521
    %v554 = vadd.f32 %v326, %v522
    %v555 = vadd.f32 %v327, %v523
    %v556 = vadd.f32 %v328, %v524
    %v557 = vadd.f32 %v329, %v525
    %v558 = vadd.f32 %v330, %v526
    %v559 = vadd.f32 %v331, %v527
    %v560 = vadd.f32 %v332, %v528
    %v561 = vadd.f32 %v333, %v529
    %v562 = vadd.f32 %v334, %v530
    %v563 = vadd.f32 %v335, %v531
    %v564 = vadd.f32 %v336, %v532
    %v565 = vadd.f32 %v337, %v533
    %v566 = vadd.f32 %v338, %v534
    %v567 = vadd.f32 %v339, %v535
    %v568 = vadd.f32 %v340, %v536
    %v569 = vadd.f32 %v341, %v537
    %v570 = vadd.f32 %v342, %v538
    %v571 = vadd.f32 %v343, %v539
    %v572 = vadd.f32 %v344, %v540
    %v573 = vadd.f32 %v345, %v541
    %v574 = vadd.f32 %v346, %v542
    %v575 = vadd.f32 %v347, %v543
    %v576 = vadd.f32 %v348, %v544
    %v577 = vadd.f32 %v349, %v545
    %v578 = vadd.f32 %v350, %v546
    %v579 = vadd.f32 %v351, %v547
    %v580 = vadd.f32 %v352, %v548
    %v581 = vadd.f32 %v353, %v549
    %v582 = vadd.f32 %v354, %v550
    %v583 = vld [vmem:[%s3] sm:$0xff]
    %v584 = vld [vmem:[%s3 + $0x8] sm:$0xff]
    %v585 = vld [vmem:[%s4] sm:$0x1]
    %v587 = vlaneseq
    %v588 = vshrl.u32 %v587, 7
    %v589 = vsub.s32 0, %v588
    %v590 = vrot.slane %v585, %v589
    %vm592 = vcmask 130048
    %v594 = vsel %vm592, %v551, 0
    %v597 = vsel %vm592, %v552, 0
    %v600 = vsel %vm592, %v553, 0
    %v603 = vsel %vm592, %v554, 0
    %v606 = vsel %vm592, %v555, 0
    %v609 = vsel %vm592, %v556, 0
    %v612 = vsel %vm592, %v557, 0
    %v615 = vsel %vm592, %v558, 0
    %v618 = vsel %vm592, %v559, 0
    %v621 = vsel %vm592, %v560, 0
    %v624 = vsel %vm592, %v561, 0
    %v627 = vsel %vm592, %v562, 0
    %v630 = vsel %vm592, %v563, 0
    %v633 = vsel %vm592, %v564, 0
    %v636 = vsel %vm592, %v565, 0
    %v639 = vsel %vm592, %v566, 0
    %v642 = vsel %vm592, %v567, 0
    %v645 = vsel %vm592, %v568, 0
    %v648 = vsel %vm592, %v569, 0
    %v651 = vsel %vm592, %v570, 0
    %v654 = vsel %vm592, %v571, 0
    %v657 = vsel %vm592, %v572, 0
    %v660 = vsel %vm592, %v573, 0
    %v663 = vsel %vm592, %v574, 0
    %v666 = vsel %vm592, %v575, 0
    %v669 = vsel %vm592, %v576, 0
    %v672 = vsel %vm592, %v577, 0
    %v675 = vsel %vm592, %v578, 0
    %v678 = vsel %vm592, %v579, 0
    %v681 = vsel %vm592, %v580, 0
    %v684 = vsel %vm592, %v581, 0
    %v687 = vsel %vm592, %v582, 0
    %689 = vmatprep.subr.mxu0 0.0
    %690 = vmatpush1.msra.mxu0 0.0
    %691 = vmatprep.subr.mxu0 0.0
    %692 = vmatpush1.msra.mxu0 0.0
    %693 = vmatprep.subr.mxu0 0.0
    %694 = vmatpush1.msra.mxu0 0.0
    %695 = vmatprep.subr.mxu0 0.0
    %696 = vmatpush1.msra.mxu0 0.0
    %697 = vmatprep.subr.mxu0 0.0
    %698 = vmatpush1.msra.mxu0 0.0
    %699 = vmatprep.subr.mxu0 0.0
    %700 = vmatpush1.msra.mxu0 0.0
    %701 = vmatprep.subr.mxu0 0.0
    %702 = vmatpush1.msra.mxu0 0.0
    %703 = vmatprep.subr.mxu0 0.0
    %704 = vmatpush1.msra.mxu0 0.0
    %705 = vmatprep.subr.mxu0 0.0
    %706 = vmatpush1.msra.mxu0 0.0
    %707 = vmatprep.subr.mxu0 0.0
    %708 = vmatpush1.msra.mxu0 0.0
    %709 = vmatprep.subr.mxu0 0.0
    %710 = vmatpush1.msra.mxu0 0.0
    %711 = vmatprep.subr.mxu0 0.0
    %712 = vmatpush1.msra.mxu0 0.0
    %713 = vmatprep.subr.mxu0 0.0
    %714 = vmatpush1.msra.mxu0 0.0
    %715 = vmatprep.subr.mxu0 0.0
    %716 = vmatpush1.msra.mxu0 0.0
    %717 = vmatprep.subr.mxu0 0.0
    %718 = vmatpush1.msra.mxu0 %v584
    %719 = vmatprep.subr.mxu0 0.0
    %720 = vmatpush1.msra.mxu0 %v583
    %721 = vmatprep.subr.mxu0 0.0
    %722 = vmatpush2.msra.mxu0 0.0
    %723 = vmatprep.subr.mxu0 0.0
    %724 = vmatpush2.msra.mxu0 0.0
    %725 = vmatprep.subr.mxu0 0.0
    %726 = vmatpush2.msra.mxu0 0.0
    %727 = vmatprep.subr.mxu0 0.0
    %728 = vmatpush2.msra.mxu0 0.0
    %729 = vmatprep.subr.mxu0 0.0
    %730 = vmatpush2.msra.mxu0 0.0
    %731 = vmatprep.subr.mxu0 0.0
    %732 = vmatpush2.msra.mxu0 0.0
    %733 = vmatprep.subr.mxu0 0.0
    %734 = vmatpush2.msra.mxu0 0.0
    %735 = vmatprep.subr.mxu0 0.0
    %736 = vmatpush2.msra.mxu0 0.0
    %737 = vmatprep.subr.mxu0 0.0
    %738 = vmatpush2.msra.mxu0 0.0
    %739 = vmatprep.subr.mxu0 0.0
    %740 = vmatpush2.msra.mxu0 0.0
    %741 = vmatprep.subr.mxu0 0.0
    %742 = vmatpush2.msra.mxu0 0.0
    %743 = vmatprep.subr.mxu0 0.0
    %744 = vmatpush2.msra.mxu0 0.0
    %745 = vmatprep.subr.mxu0 0.0
    %746 = vmatpush2.msra.mxu0 0.0
    %747 = vmatprep.subr.mxu0 0.0
    %748 = vmatpush2.msra.mxu0 0.0
    %749 = vmatprep.subr.mxu0 0.0
    %750 = vmatpush2.msra.mxu0 0.0
    %751 = vmatprep.subr.mxu0 0.0
    %752 = vmatpush2.msra.mxu0 0.0
    %753 = vmatprep.mubr.f32.mxu0 0.0
    %754 = vmatmul.mubr.f32.gmra.mxu0 %v594
    %v755 = vpop.f32.mrf.mxu0
    %v756 = vadd.f32 %v590, %v755
    %v757 = vpop.f32.mrf.mxu0
    %758 = vmatprep.mubr.f32.mxu0 0.0
    %759 = vmatmul.mubr.f32.gmra.mxu0 %v597
    %v760 = vpop.f32.mrf.mxu0
    %v761 = vadd.f32 %v590, %v760
    %v762 = vpop.f32.mrf.mxu0
    %763 = vmatprep.mubr.f32.mxu0 0.0
    %764 = vmatmul.mubr.f32.gmra.mxu0 %v600
    %v765 = vpop.f32.mrf.mxu0
    %v766 = vadd.f32 %v590, %v765
    %v767 = vpop.f32.mrf.mxu0
    %768 = vmatprep.mubr.f32.mxu0 0.0
    %769 = vmatmul.mubr.f32.gmra.mxu0 %v603
    %v770 = vpop.f32.mrf.mxu0
    %v771 = vadd.f32 %v590, %v770
    %v772 = vpop.f32.mrf.mxu0
    %773 = vmatprep.mubr.f32.mxu0 0.0
    %774 = vmatmul.mubr.f32.gmra.mxu0 %v606
    %v775 = vpop.f32.mrf.mxu0
    %v776 = vadd.f32 %v590, %v775
    %v777 = vpop.f32.mrf.mxu0
    %778 = vmatprep.mubr.f32.mxu0 0.0
    %779 = vmatmul.mubr.f32.gmra.mxu0 %v609
    %v780 = vpop.f32.mrf.mxu0
    %v781 = vadd.f32 %v590, %v780
    %v782 = vpop.f32.mrf.mxu0
    %783 = vmatprep.mubr.f32.mxu0 0.0
    %784 = vmatmul.mubr.f32.gmra.mxu0 %v612
    %v785 = vpop.f32.mrf.mxu0
    %v786 = vadd.f32 %v590, %v785
    %v787 = vpop.f32.mrf.mxu0
    %788 = vmatprep.mubr.f32.mxu0 0.0
    %789 = vmatmul.mubr.f32.gmra.mxu0 %v615
    %v790 = vpop.f32.mrf.mxu0
    %v791 = vadd.f32 %v590, %v790
    %v792 = vpop.f32.mrf.mxu0
    %793 = vmatprep.mubr.f32.mxu0 0.0
    %794 = vmatmul.mubr.f32.gmra.mxu0 %v618
    %v795 = vpop.f32.mrf.mxu0
    %v796 = vadd.f32 %v590, %v795
    %v797 = vpop.f32.mrf.mxu0
    %798 = vmatprep.mubr.f32.mxu0 0.0
    %799 = vmatmul.mubr.f32.gmra.mxu0 %v621
    %v800 = vpop.f32.mrf.mxu0
    %v801 = vadd.f32 %v590, %v800
    %v802 = vpop.f32.mrf.mxu0
    %803 = vmatprep.mubr.f32.mxu0 0.0
    %804 = vmatmul.mubr.f32.gmra.mxu0 %v624
    %v805 = vpop.f32.mrf.mxu0
    %v806 = vadd.f32 %v590, %v805
    %v807 = vpop.f32.mrf.mxu0
    %808 = vmatprep.mubr.f32.mxu0 0.0
    %809 = vmatmul.mubr.f32.gmra.mxu0 %v627
    %v810 = vpop.f32.mrf.mxu0
    %v811 = vadd.f32 %v590, %v810
    %v812 = vpop.f32.mrf.mxu0
    %813 = vmatprep.mubr.f32.mxu0 0.0
    %814 = vmatmul.mubr.f32.gmra.mxu0 %v630
    %v815 = vpop.f32.mrf.mxu0
    %v816 = vadd.f32 %v590, %v815
    %v817 = vpop.f32.mrf.mxu0
    %818 = vmatprep.mubr.f32.mxu0 0.0
    %819 = vmatmul.mubr.f32.gmra.mxu0 %v633
    %v820 = vpop.f32.mrf.mxu0
    %v821 = vadd.f32 %v590, %v820
    %v822 = vpop.f32.mrf.mxu0
    %823 = vmatprep.mubr.f32.mxu0 0.0
    %824 = vmatmul.mubr.f32.gmra.mxu0 %v636
    %v825 = vpop.f32.mrf.mxu0
    %v826 = vadd.f32 %v590, %v825
    %v827 = vpop.f32.mrf.mxu0
    %828 = vmatprep.mubr.f32.mxu0 0.0
    %829 = vmatmul.mubr.f32.gmra.mxu0 %v639
    %v830 = vpop.f32.mrf.mxu0
    %v831 = vadd.f32 %v590, %v830
    %v832 = vpop.f32.mrf.mxu0
    %833 = vmatprep.mubr.f32.mxu0 0.0
    %834 = vmatmul.mubr.f32.gmra.mxu0 %v642
    %v835 = vpop.f32.mrf.mxu0
    %v836 = vadd.f32 %v590, %v835
    %v837 = vpop.f32.mrf.mxu0
    %838 = vmatprep.mubr.f32.mxu0 0.0
    %839 = vmatmul.mubr.f32.gmra.mxu0 %v645
    %v840 = vpop.f32.mrf.mxu0
    %v841 = vadd.f32 %v590, %v840
    %v842 = vpop.f32.mrf.mxu0
    %843 = vmatprep.mubr.f32.mxu0 0.0
    %844 = vmatmul.mubr.f32.gmra.mxu0 %v648
    %v845 = vpop.f32.mrf.mxu0
    %v846 = vadd.f32 %v590, %v845
    %v847 = vpop.f32.mrf.mxu0
    %848 = vmatprep.mubr.f32.mxu0 0.0
    %849 = vmatmul.mubr.f32.gmra.mxu0 %v651
    %v850 = vpop.f32.mrf.mxu0
    %v851 = vadd.f32 %v590, %v850
    %v852 = vpop.f32.mrf.mxu0
    %853 = vmatprep.mubr.f32.mxu0 0.0
    %854 = vmatmul.mubr.f32.gmra.mxu0 %v654
    %v855 = vpop.f32.mrf.mxu0
    %v856 = vadd.f32 %v590, %v855
    %v857 = vpop.f32.mrf.mxu0
    %858 = vmatprep.mubr.f32.mxu0 0.0
    %859 = vmatmul.mubr.f32.gmra.mxu0 %v657
    %v860 = vpop.f32.mrf.mxu0
    %v861 = vadd.f32 %v590, %v860
    %v862 = vpop.f32.mrf.mxu0
    %863 = vmatprep.mubr.f32.mxu0 0.0
    %864 = vmatmul.mubr.f32.gmra.mxu0 %v660
    %v865 = vpop.f32.mrf.mxu0
    %v866 = vadd.f32 %v590, %v865
    %v867 = vpop.f32.mrf.mxu0
    %868 = vmatprep.mubr.f32.mxu0 0.0
    %869 = vmatmul.mubr.f32.gmra.mxu0 %v663
    %v870 = vpop.f32.mrf.mxu0
    %v871 = vadd.f32 %v590, %v870
    %v872 = vpop.f32.mrf.mxu0
    %873 = vmatprep.mubr.f32.mxu0 0.0
    %874 = vmatmul.mubr.f32.gmra.mxu0 %v666
    %v875 = vpop.f32.mrf.mxu0
    %v876 = vadd.f32 %v590, %v875
    %v877 = vpop.f32.mrf.mxu0
    %878 = vmatprep.mubr.f32.mxu0 0.0
    %879 = vmatmul.mubr.f32.gmra.mxu0 %v669
    %v880 = vpop.f32.mrf.mxu0
    %v881 = vadd.f32 %v590, %v880
    %v882 = vpop.f32.mrf.mxu0
    %883 = vmatprep.mubr.f32.mxu0 0.0
    %884 = vmatmul.mubr.f32.gmra.mxu0 %v672
    %v885 = vpop.f32.mrf.mxu0
    %v886 = vadd.f32 %v590, %v885
    %v887 = vpop.f32.mrf.mxu0
    %888 = vmatprep.mubr.f32.mxu0 0.0
    %889 = vmatmul.mubr.f32.gmra.mxu0 %v675
    %v890 = vpop.f32.mrf.mxu0
    %v891 = vadd.f32 %v590, %v890
    %v892 = vpop.f32.mrf.mxu0
    %893 = vmatprep.mubr.f32.mxu0 0.0
    %894 = vmatmul.mubr.f32.gmra.mxu0 %v678
    %v895 = vpop.f32.mrf.mxu0
    %v896 = vadd.f32 %v590, %v895
    %v897 = vpop.f32.mrf.mxu0
    %898 = vmatprep.mubr.f32.mxu0 0.0
    %899 = vmatmul.mubr.f32.gmra.mxu0 %v681
    %v900 = vpop.f32.mrf.mxu0
    %v901 = vadd.f32 %v590, %v900
    %v902 = vpop.f32.mrf.mxu0
    %903 = vmatprep.mubr.f32.mxu0 0.0
    %904 = vmatmul.mubr.f32.gmra.mxu0 %v684
    %v905 = vpop.f32.mrf.mxu0
    %v906 = vadd.f32 %v590, %v905
    %v907 = vpop.f32.mrf.mxu0
    %908 = vmatprep.mubr.f32.mxu0 0.0
    %909 = vmatmul.mubr.f32.gmra.mxu0 %v687
    %v910 = vpop.f32.mrf.mxu0
    %v911 = vadd.f32 %v590, %v910
    %v912 = vpop.f32.mrf.mxu0
    %913 = vdwg.mxu0
    %v914 = vmul.f32 %v130, %v756
    %v915 = vmul.f32 %v135, %v761
    %v916 = vmul.f32 %v140, %v766
    %v917 = vmul.f32 %v145, %v771
    %v918 = vmul.f32 %v150, %v776
    %v919 = vmul.f32 %v155, %v781
    %v920 = vmul.f32 %v160, %v786
    %v921 = vmul.f32 %v165, %v791
    %v922 = vmul.f32 %v170, %v796
    %v923 = vmul.f32 %v175, %v801
    %v924 = vmul.f32 %v180, %v806
    %v925 = vmul.f32 %v185, %v811
    %v926 = vmul.f32 %v190, %v816
    %v927 = vmul.f32 %v195, %v821
    %v928 = vmul.f32 %v200, %v826
    %v929 = vmul.f32 %v205, %v831
    %v930 = vmul.f32 %v210, %v836
    %v931 = vmul.f32 %v215, %v841
    %v932 = vmul.f32 %v220, %v846
    %v933 = vmul.f32 %v225, %v851
    %v934 = vmul.f32 %v230, %v856
    %v935 = vmul.f32 %v235, %v861
    %v936 = vmul.f32 %v240, %v866
    %v937 = vmul.f32 %v245, %v871
    %v938 = vmul.f32 %v250, %v876
    %v939 = vmul.f32 %v255, %v881
    %v940 = vmul.f32 %v260, %v886
    %v941 = vmul.f32 %v265, %v891
    %v942 = vmul.f32 %v270, %v896
    %v943 = vmul.f32 %v275, %v901
    %v944 = vmul.f32 %v280, %v906
    %v945 = vmul.f32 %v285, %v911
    %v946 = vmul.f32 %v358, %v756
    %v947 = vmul.f32 %v363, %v761
    %v948 = vmul.f32 %v368, %v766
    %v949 = vmul.f32 %v373, %v771
    %v950 = vmul.f32 %v378, %v776
    %v951 = vmul.f32 %v383, %v781
    %v952 = vmul.f32 %v388, %v786
    %v953 = vmul.f32 %v393, %v791
    %v954 = vmul.f32 %v398, %v796
    %v955 = vmul.f32 %v403, %v801
    %v956 = vmul.f32 %v408, %v806
    %v957 = vmul.f32 %v413, %v811
    %v958 = vmul.f32 %v418, %v816
    %v959 = vmul.f32 %v423, %v821
    %v960 = vmul.f32 %v428, %v826
    %v961 = vmul.f32 %v433, %v831
    %v962 = vmul.f32 %v438, %v836
    %v963 = vmul.f32 %v443, %v841
    %v964 = vmul.f32 %v448, %v846
    %v965 = vmul.f32 %v453, %v851
    %v966 = vmul.f32 %v458, %v856
    %v967 = vmul.f32 %v463, %v861
    %v968 = vmul.f32 %v468, %v866
    %v969 = vmul.f32 %v473, %v871
    %v970 = vmul.f32 %v478, %v876
    %v971 = vmul.f32 %v483, %v881
    %v972 = vmul.f32 %v488, %v886
    %v973 = vmul.f32 %v493, %v891
    %v974 = vmul.f32 %v498, %v896
    %v975 = vmul.f32 %v503, %v901
    %v976 = vmul.f32 %v508, %v906
    %v977 = vmul.f32 %v513, %v911
    %1010 = vrot.lane.b32.xlu0 %v946, 96
    %v1011 = vpop.permute.xlu0 %1010
    %1012 = vrot.lane.b32.xlu0 %v947, 96
    %v1013 = vpop.permute.xlu0 %1012
    %1014 = vrot.lane.b32.xlu0 %v948, 96
    %v1015 = vpop.permute.xlu0 %1014
    %1016 = vrot.lane.b32.xlu0 %v949, 96
    %v1017 = vpop.permute.xlu0 %1016
    %1018 = vrot.lane.b32.xlu0 %v950, 96
    %v1019 = vpop.permute.xlu0 %1018
    %1020 = vrot.lane.b32.xlu0 %v951, 96
    %v1021 = vpop.permute.xlu0 %1020
    %1022 = vrot.lane.b32.xlu0 %v952, 96
    %v1023 = vpop.permute.xlu0 %1022
    %1024 = vrot.lane.b32.xlu0 %v953, 96
    %v1025 = vpop.permute.xlu0 %1024
    %1026 = vrot.lane.b32.xlu0 %v954, 96
    %v1027 = vpop.permute.xlu0 %1026
    %1028 = vrot.lane.b32.xlu0 %v955, 96
    %v1029 = vpop.permute.xlu0 %1028
    %1030 = vrot.lane.b32.xlu0 %v956, 96
    %v1031 = vpop.permute.xlu0 %1030
    %1032 = vrot.lane.b32.xlu0 %v957, 96
    %v1033 = vpop.permute.xlu0 %1032
    %1034 = vrot.lane.b32.xlu0 %v958, 96
    %v1035 = vpop.permute.xlu0 %1034
    %1036 = vrot.lane.b32.xlu0 %v959, 96
    %v1037 = vpop.permute.xlu0 %1036
    %1038 = vrot.lane.b32.xlu0 %v960, 96
    %v1039 = vpop.permute.xlu0 %1038
    %1040 = vrot.lane.b32.xlu0 %v961, 96
    %v1041 = vpop.permute.xlu0 %1040
    %1042 = vrot.lane.b32.xlu0 %v962, 96
    %v1043 = vpop.permute.xlu0 %1042
    %1044 = vrot.lane.b32.xlu0 %v963, 96
    %v1045 = vpop.permute.xlu0 %1044
    %1046 = vrot.lane.b32.xlu0 %v964, 96
    %v1047 = vpop.permute.xlu0 %1046
    %1048 = vrot.lane.b32.xlu0 %v965, 96
    %v1049 = vpop.permute.xlu0 %1048
    %1050 = vrot.lane.b32.xlu0 %v966, 96
    %v1051 = vpop.permute.xlu0 %1050
    %1052 = vrot.lane.b32.xlu0 %v967, 96
    %v1053 = vpop.permute.xlu0 %1052
    %1054 = vrot.lane.b32.xlu0 %v968, 96
    %v1055 = vpop.permute.xlu0 %1054
    %1056 = vrot.lane.b32.xlu0 %v969, 96
    %v1057 = vpop.permute.xlu0 %1056
    %1058 = vrot.lane.b32.xlu0 %v970, 96
    %v1059 = vpop.permute.xlu0 %1058
    %1060 = vrot.lane.b32.xlu0 %v971, 96
    %v1061 = vpop.permute.xlu0 %1060
    %1062 = vrot.lane.b32.xlu0 %v972, 96
    %v1063 = vpop.permute.xlu0 %1062
    %1064 = vrot.lane.b32.xlu0 %v973, 96
    %v1065 = vpop.permute.xlu0 %1064
    %1066 = vrot.lane.b32.xlu0 %v974, 96
    %v1067 = vpop.permute.xlu0 %1066
    %1068 = vrot.lane.b32.xlu0 %v975, 96
    %v1069 = vpop.permute.xlu0 %1068
    %1070 = vrot.lane.b32.xlu0 %v976, 96
    %v1071 = vpop.permute.xlu0 %1070
    %1072 = vrot.lane.b32.xlu0 %v977, 96
    %v1073 = vpop.permute.xlu0 %1072
    %v1106 = vadd.f32 %v914, %v1011
    %v1107 = vadd.f32 %v915, %v1013
    %v1108 = vadd.f32 %v916, %v1015
    %v1109 = vadd.f32 %v917, %v1017
    %v1110 = vadd.f32 %v918, %v1019
    %v1111 = vadd.f32 %v919, %v1021
    %v1112 = vadd.f32 %v920, %v1023
    %v1113 = vadd.f32 %v921, %v1025
    %v1114 = vadd.f32 %v922, %v1027
    %v1115 = vadd.f32 %v923, %v1029
    %v1116 = vadd.f32 %v924, %v1031
    %v1117 = vadd.f32 %v925, %v1033
    %v1118 = vadd.f32 %v926, %v1035
    %v1119 = vadd.f32 %v927, %v1037
    %v1120 = vadd.f32 %v928, %v1039
    %v1121 = vadd.f32 %v929, %v1041
    %v1122 = vadd.f32 %v930, %v1043
    %v1123 = vadd.f32 %v931, %v1045
    %v1124 = vadd.f32 %v932, %v1047
    %v1125 = vadd.f32 %v933, %v1049
    %v1126 = vadd.f32 %v934, %v1051
    %v1127 = vadd.f32 %v935, %v1053
    %v1128 = vadd.f32 %v936, %v1055
    %v1129 = vadd.f32 %v937, %v1057
    %v1130 = vadd.f32 %v938, %v1059
    %v1131 = vadd.f32 %v939, %v1061
    %v1132 = vadd.f32 %v940, %v1063
    %v1133 = vadd.f32 %v941, %v1065
    %v1134 = vadd.f32 %v942, %v1067
    %v1135 = vadd.f32 %v943, %v1069
    %v1136 = vadd.f32 %v944, %v1071
    %v1137 = vadd.f32 %v945, %v1073
    %v1138 = vld [vmem:[%s5] sm:$0xff]
    %v1139 = vld [vmem:[%s5 + $0x8] sm:$0xff]
    %v1140 = vld [vmem:[%s5 + $0x10] sm:$0xff]
    %v1141 = vld [vmem:[%s5 + $0x18] sm:$0xff]
    %vm1142 = vcmask 261120
    %v1144 = vsel %vm1142, %v1106, 0
    %v1147 = vsel %vm1142, %v1107, 0
    %v1150 = vsel %vm1142, %v1108, 0
    %v1153 = vsel %vm1142, %v1109, 0
    %v1156 = vsel %vm1142, %v1110, 0
    %v1159 = vsel %vm1142, %v1111, 0
    %v1162 = vsel %vm1142, %v1112, 0
    %v1165 = vsel %vm1142, %v1113, 0
    %v1168 = vsel %vm1142, %v1114, 0
    %v1171 = vsel %vm1142, %v1115, 0
    %v1174 = vsel %vm1142, %v1116, 0
    %v1177 = vsel %vm1142, %v1117, 0
    %v1180 = vsel %vm1142, %v1118, 0
    %v1183 = vsel %vm1142, %v1119, 0
    %v1186 = vsel %vm1142, %v1120, 0
    %v1189 = vsel %vm1142, %v1121, 0
    %v1192 = vsel %vm1142, %v1122, 0
    %v1195 = vsel %vm1142, %v1123, 0
    %v1198 = vsel %vm1142, %v1124, 0
    %v1201 = vsel %vm1142, %v1125, 0
    %v1204 = vsel %vm1142, %v1126, 0
    %v1207 = vsel %vm1142, %v1127, 0
    %v1210 = vsel %vm1142, %v1128, 0
    %v1213 = vsel %vm1142, %v1129, 0
    %v1216 = vsel %vm1142, %v1130, 0
    %v1219 = vsel %vm1142, %v1131, 0
    %v1222 = vsel %vm1142, %v1132, 0
    %v1225 = vsel %vm1142, %v1133, 0
    %v1228 = vsel %vm1142, %v1134, 0
    %v1231 = vsel %vm1142, %v1135, 0
    %v1234 = vsel %vm1142, %v1136, 0
    %v1237 = vsel %vm1142, %v1137, 0
    %1239 = vmatprep.subr.mxu0 0.0
    %1240 = vmatpush1.msra.mxu0 0.0
    %1241 = vmatprep.subr.mxu0 0.0
    %1242 = vmatpush1.msra.mxu0 0.0
    %1243 = vmatprep.subr.mxu0 0.0
    %1244 = vmatpush1.msra.mxu0 0.0
    %1245 = vmatprep.subr.mxu0 0.0
    %1246 = vmatpush1.msra.mxu0 0.0
    %1247 = vmatprep.subr.mxu0 0.0
    %1248 = vmatpush1.msra.mxu0 0.0
    %1249 = vmatprep.subr.mxu0 0.0
    %1250 = vmatpush1.msra.mxu0 0.0
    %1251 = vmatprep.subr.mxu0 0.0
    %1252 = vmatpush1.msra.mxu0 0.0
    %1253 = vmatprep.subr.mxu0 0.0
    %1254 = vmatpush1.msra.mxu0 0.0
    %1255 = vmatprep.subr.mxu0 0.0
    %1256 = vmatpush1.msra.mxu0 0.0
    %1257 = vmatprep.subr.mxu0 0.0
    %1258 = vmatpush1.msra.mxu0 0.0
    %1259 = vmatprep.subr.mxu0 0.0
    %1260 = vmatpush1.msra.mxu0 0.0
    %1261 = vmatprep.subr.mxu0 0.0
    %1262 = vmatpush1.msra.mxu0 0.0
    %1263 = vmatprep.subr.mxu0 0.0
    %1264 = vmatpush1.msra.mxu0 %v1141
    %1265 = vmatprep.subr.mxu0 0.0
    %1266 = vmatpush1.msra.mxu0 %v1140
    %1267 = vmatprep.subr.mxu0 0.0
    %1268 = vmatpush1.msra.mxu0 %v1139
    %1269 = vmatprep.subr.mxu0 0.0
    %1270 = vmatpush1.msra.mxu0 %v1138
    %1271 = vmatprep.subr.mxu0 0.0
    %1272 = vmatpush2.msra.mxu0 0.0
    %1273 = vmatprep.subr.mxu0 0.0
    %1274 = vmatpush2.msra.mxu0 0.0
    %1275 = vmatprep.subr.mxu0 0.0
    %1276 = vmatpush2.msra.mxu0 0.0
    %1277 = vmatprep.subr.mxu0 0.0
    %1278 = vmatpush2.msra.mxu0 0.0
    %1279 = vmatprep.subr.mxu0 0.0
    %1280 = vmatpush2.msra.mxu0 0.0
    %1281 = vmatprep.subr.mxu0 0.0
    %1282 = vmatpush2.msra.mxu0 0.0
    %1283 = vmatprep.subr.mxu0 0.0
    %1284 = vmatpush2.msra.mxu0 0.0
    %1285 = vmatprep.subr.mxu0 0.0
    %1286 = vmatpush2.msra.mxu0 0.0
    %1287 = vmatprep.subr.mxu0 0.0
    %1288 = vmatpush2.msra.mxu0 0.0
    %1289 = vmatprep.subr.mxu0 0.0
    %1290 = vmatpush2.msra.mxu0 0.0
    %1291 = vmatprep.subr.mxu0 0.0
    %1292 = vmatpush2.msra.mxu0 0.0
    %1293 = vmatprep.subr.mxu0 0.0
    %1294 = vmatpush2.msra.mxu0 0.0
    %1295 = vmatprep.subr.mxu0 0.0
    %1296 = vmatpush2.msra.mxu0 0.0
    %1297 = vmatprep.subr.mxu0 0.0
    %1298 = vmatpush2.msra.mxu0 0.0
    %1299 = vmatprep.subr.mxu0 0.0
    %1300 = vmatpush2.msra.mxu0 0.0
    %1301 = vmatprep.subr.mxu0 0.0
    %1302 = vmatpush2.msra.mxu0 0.0
    %1303 = vmatprep.mubr.f32.mxu0 0.0
    %1304 = vmatmul.mubr.f32.gmra.mxu0 %v1144
    %v1305 = vpop.f32.mrf.mxu0
    %v1306 = vadd.f32 0.0, %v1305
    %v1307 = vpop.f32.mrf.mxu0
    %1308 = vmatprep.mubr.f32.mxu0 0.0
    %1309 = vmatmul.mubr.f32.gmra.mxu0 %v1147
    %v1310 = vpop.f32.mrf.mxu0
    %v1311 = vadd.f32 0.0, %v1310
    %v1312 = vpop.f32.mrf.mxu0
    %1313 = vmatprep.mubr.f32.mxu0 0.0
    %1314 = vmatmul.mubr.f32.gmra.mxu0 %v1150
    %v1315 = vpop.f32.mrf.mxu0
    %v1316 = vadd.f32 0.0, %v1315
    %v1317 = vpop.f32.mrf.mxu0
    %1318 = vmatprep.mubr.f32.mxu0 0.0
    %1319 = vmatmul.mubr.f32.gmra.mxu0 %v1153
    %v1320 = vpop.f32.mrf.mxu0
    %v1321 = vadd.f32 0.0, %v1320
    %v1322 = vpop.f32.mrf.mxu0
    %1323 = vmatprep.mubr.f32.mxu0 0.0
    %1324 = vmatmul.mubr.f32.gmra.mxu0 %v1156
    %v1325 = vpop.f32.mrf.mxu0
    %v1326 = vadd.f32 0.0, %v1325
    %v1327 = vpop.f32.mrf.mxu0
    %1328 = vmatprep.mubr.f32.mxu0 0.0
    %1329 = vmatmul.mubr.f32.gmra.mxu0 %v1159
    %v1330 = vpop.f32.mrf.mxu0
    %v1331 = vadd.f32 0.0, %v1330
    %v1332 = vpop.f32.mrf.mxu0
    %1333 = vmatprep.mubr.f32.mxu0 0.0
    %1334 = vmatmul.mubr.f32.gmra.mxu0 %v1162
    %v1335 = vpop.f32.mrf.mxu0
    %v1336 = vadd.f32 0.0, %v1335
    %v1337 = vpop.f32.mrf.mxu0
    %1338 = vmatprep.mubr.f32.mxu0 0.0
    %1339 = vmatmul.mubr.f32.gmra.mxu0 %v1165
    %v1340 = vpop.f32.mrf.mxu0
    %v1341 = vadd.f32 0.0, %v1340
    %v1342 = vpop.f32.mrf.mxu0
    %1343 = vmatprep.mubr.f32.mxu0 0.0
    %1344 = vmatmul.mubr.f32.gmra.mxu0 %v1168
    %v1345 = vpop.f32.mrf.mxu0
    %v1346 = vadd.f32 0.0, %v1345
    %v1347 = vpop.f32.mrf.mxu0
    %1348 = vmatprep.mubr.f32.mxu0 0.0
    %1349 = vmatmul.mubr.f32.gmra.mxu0 %v1171
    %v1350 = vpop.f32.mrf.mxu0
    %v1351 = vadd.f32 0.0, %v1350
    %v1352 = vpop.f32.mrf.mxu0
    %1353 = vmatprep.mubr.f32.mxu0 0.0
    %1354 = vmatmul.mubr.f32.gmra.mxu0 %v1174
    %v1355 = vpop.f32.mrf.mxu0
    %v1356 = vadd.f32 0.0, %v1355
    %v1357 = vpop.f32.mrf.mxu0
    %1358 = vmatprep.mubr.f32.mxu0 0.0
    %1359 = vmatmul.mubr.f32.gmra.mxu0 %v1177
    %v1360 = vpop.f32.mrf.mxu0
    %v1361 = vadd.f32 0.0, %v1360
    %v1362 = vpop.f32.mrf.mxu0
    %1363 = vmatprep.mubr.f32.mxu0 0.0
    %1364 = vmatmul.mubr.f32.gmra.mxu0 %v1180
    %v1365 = vpop.f32.mrf.mxu0
    %v1366 = vadd.f32 0.0, %v1365
    %v1367 = vpop.f32.mrf.mxu0
    %1368 = vmatprep.mubr.f32.mxu0 0.0
    %1369 = vmatmul.mubr.f32.gmra.mxu0 %v1183
    %v1370 = vpop.f32.mrf.mxu0
    %v1371 = vadd.f32 0.0, %v1370
    %v1372 = vpop.f32.mrf.mxu0
    %1373 = vmatprep.mubr.f32.mxu0 0.0
    %1374 = vmatmul.mubr.f32.gmra.mxu0 %v1186
    %v1375 = vpop.f32.mrf.mxu0
    %v1376 = vadd.f32 0.0, %v1375
    %v1377 = vpop.f32.mrf.mxu0
    %1378 = vmatprep.mubr.f32.mxu0 0.0
    %1379 = vmatmul.mubr.f32.gmra.mxu0 %v1189
    %v1380 = vpop.f32.mrf.mxu0
    %v1381 = vadd.f32 0.0, %v1380
    %v1382 = vpop.f32.mrf.mxu0
    %1383 = vmatprep.mubr.f32.mxu0 0.0
    %1384 = vmatmul.mubr.f32.gmra.mxu0 %v1192
    %v1385 = vpop.f32.mrf.mxu0
    %v1386 = vadd.f32 0.0, %v1385
    %v1387 = vpop.f32.mrf.mxu0
    %1388 = vmatprep.mubr.f32.mxu0 0.0
    %1389 = vmatmul.mubr.f32.gmra.mxu0 %v1195
    %v1390 = vpop.f32.mrf.mxu0
    %v1391 = vadd.f32 0.0, %v1390
    %v1392 = vpop.f32.mrf.mxu0
    %1393 = vmatprep.mubr.f32.mxu0 0.0
    %1394 = vmatmul.mubr.f32.gmra.mxu0 %v1198
    %v1395 = vpop.f32.mrf.mxu0
    %v1396 = vadd.f32 0.0, %v1395
    %v1397 = vpop.f32.mrf.mxu0
    %1398 = vmatprep.mubr.f32.mxu0 0.0
    %1399 = vmatmul.mubr.f32.gmra.mxu0 %v1201
    %v1400 = vpop.f32.mrf.mxu0
    %v1401 = vadd.f32 0.0, %v1400
    %v1402 = vpop.f32.mrf.mxu0
    %1403 = vmatprep.mubr.f32.mxu0 0.0
    %1404 = vmatmul.mubr.f32.gmra.mxu0 %v1204
    %v1405 = vpop.f32.mrf.mxu0
    %v1406 = vadd.f32 0.0, %v1405
    %v1407 = vpop.f32.mrf.mxu0
    %1408 = vmatprep.mubr.f32.mxu0 0.0
    %1409 = vmatmul.mubr.f32.gmra.mxu0 %v1207
    %v1410 = vpop.f32.mrf.mxu0
    %v1411 = vadd.f32 0.0, %v1410
    %v1412 = vpop.f32.mrf.mxu0
    %1413 = vmatprep.mubr.f32.mxu0 0.0
    %1414 = vmatmul.mubr.f32.gmra.mxu0 %v1210
    %v1415 = vpop.f32.mrf.mxu0
    %v1416 = vadd.f32 0.0, %v1415
    %v1417 = vpop.f32.mrf.mxu0
    %1418 = vmatprep.mubr.f32.mxu0 0.0
    %1419 = vmatmul.mubr.f32.gmra.mxu0 %v1213
    %v1420 = vpop.f32.mrf.mxu0
    %v1421 = vadd.f32 0.0, %v1420
    %v1422 = vpop.f32.mrf.mxu0
    %1423 = vmatprep.mubr.f32.mxu0 0.0
    %1424 = vmatmul.mubr.f32.gmra.mxu0 %v1216
    %v1425 = vpop.f32.mrf.mxu0
    %v1426 = vadd.f32 0.0, %v1425
    %v1427 = vpop.f32.mrf.mxu0
    %1428 = vmatprep.mubr.f32.mxu0 0.0
    %1429 = vmatmul.mubr.f32.gmra.mxu0 %v1219
    %v1430 = vpop.f32.mrf.mxu0
    %v1431 = vadd.f32 0.0, %v1430
    %v1432 = vpop.f32.mrf.mxu0
    %1433 = vmatprep.mubr.f32.mxu0 0.0
    %1434 = vmatmul.mubr.f32.gmra.mxu0 %v1222
    %v1435 = vpop.f32.mrf.mxu0
    %v1436 = vadd.f32 0.0, %v1435
    %v1437 = vpop.f32.mrf.mxu0
    %1438 = vmatprep.mubr.f32.mxu0 0.0
    %1439 = vmatmul.mubr.f32.gmra.mxu0 %v1225
    %v1440 = vpop.f32.mrf.mxu0
    %v1441 = vadd.f32 0.0, %v1440
    %v1442 = vpop.f32.mrf.mxu0
    %1443 = vmatprep.mubr.f32.mxu0 0.0
    %1444 = vmatmul.mubr.f32.gmra.mxu0 %v1228
    %v1445 = vpop.f32.mrf.mxu0
    %v1446 = vadd.f32 0.0, %v1445
    %v1447 = vpop.f32.mrf.mxu0
    %1448 = vmatprep.mubr.f32.mxu0 0.0
    %1449 = vmatmul.mubr.f32.gmra.mxu0 %v1231
    %v1450 = vpop.f32.mrf.mxu0
    %v1451 = vadd.f32 0.0, %v1450
    %v1452 = vpop.f32.mrf.mxu0
    %1453 = vmatprep.mubr.f32.mxu0 0.0
    %1454 = vmatmul.mubr.f32.gmra.mxu0 %v1234
    %v1455 = vpop.f32.mrf.mxu0
    %v1456 = vadd.f32 0.0, %v1455
    %v1457 = vpop.f32.mrf.mxu0
    %1458 = vmatprep.mubr.f32.mxu0 0.0
    %1459 = vmatmul.mubr.f32.gmra.mxu0 %v1237
    %v1460 = vpop.f32.mrf.mxu0
    %v1461 = vadd.f32 0.0, %v1460
    %v1462 = vpop.f32.mrf.mxu0
    %1463 = vdwg.mxu0
    %v1464 = vpack.c.bf16 %v1311, %v1306
    %v1465 = vpack.c.bf16 %v1321, %v1316
    %v1466 = vpack.c.bf16 %v1331, %v1326
    %v1467 = vpack.c.bf16 %v1341, %v1336
    %v1468 = vpack.c.bf16 %v1351, %v1346
    %v1469 = vpack.c.bf16 %v1361, %v1356
    %v1470 = vpack.c.bf16 %v1371, %v1366
    %v1471 = vpack.c.bf16 %v1381, %v1376
    %v1472 = vpack.c.bf16 %v1391, %v1386
    %v1473 = vpack.c.bf16 %v1401, %v1396
    %v1474 = vpack.c.bf16 %v1411, %v1406
    %v1475 = vpack.c.bf16 %v1421, %v1416
    %v1476 = vpack.c.bf16 %v1431, %v1426
    %v1477 = vpack.c.bf16 %v1441, %v1436
    %v1478 = vpack.c.bf16 %v1451, %v1446
    %v1479 = vpack.c.bf16 %v1461, %v1456
    %v1496 = vunpack.c.l.b16 %v1464
    %v1497 = vunpack.c.h.b16 %v1464
    %v1498 = vunpack.c.l.b16 %v1465
    %v1499 = vunpack.c.h.b16 %v1465
    %v1500 = vunpack.c.l.b16 %v1466
    %v1501 = vunpack.c.h.b16 %v1466
    %v1502 = vunpack.c.l.b16 %v1467
    %v1503 = vunpack.c.h.b16 %v1467
    %v1504 = vunpack.c.l.b16 %v1468
    %v1505 = vunpack.c.h.b16 %v1468
    %v1506 = vunpack.c.l.b16 %v1469
    %v1507 = vunpack.c.h.b16 %v1469
    %v1508 = vunpack.c.l.b16 %v1470
    %v1509 = vunpack.c.h.b16 %v1470
    %v1510 = vunpack.c.l.b16 %v1471
    %v1511 = vunpack.c.h.b16 %v1471
    %v1512 = vunpack.c.l.b16 %v1472
    %v1513 = vunpack.c.h.b16 %v1472
    %v1514 = vunpack.c.l.b16 %v1473
    %v1515 = vunpack.c.h.b16 %v1473
    %v1516 = vunpack.c.l.b16 %v1474
    %v1517 = vunpack.c.h.b16 %v1474
    %v1518 = vunpack.c.l.b16 %v1475
    %v1519 = vunpack.c.h.b16 %v1475
    %v1520 = vunpack.c.l.b16 %v1476
    %v1521 = vunpack.c.h.b16 %v1476
    %v1522 = vunpack.c.l.b16 %v1477
    %v1523 = vunpack.c.h.b16 %v1477
    %v1524 = vunpack.c.l.b16 %v1478
    %v1525 = vunpack.c.h.b16 %v1478
    %v1526 = vunpack.c.l.b16 %v1479
    %v1527 = vunpack.c.h.b16 %v1479
    %v1528 = vpack.c.b16 %v1496, %v1496
    %v1529 = vpack.c.b16 %v1497, %v1497
    %v1530 = vpack.c.b16 %v1498, %v1498
    %v1531 = vpack.c.b16 %v1499, %v1499
    %v1532 = vpack.c.b16 %v1500, %v1500
    %v1533 = vpack.c.b16 %v1501, %v1501
    %v1534 = vpack.c.b16 %v1502, %v1502
    %v1535 = vpack.c.b16 %v1503, %v1503
    %v1536 = vpack.c.b16 %v1504, %v1504
    %v1537 = vpack.c.b16 %v1505, %v1505
    %v1538 = vpack.c.b16 %v1506, %v1506
    %v1539 = vpack.c.b16 %v1507, %v1507
    %v1540 = vpack.c.b16 %v1508, %v1508
    %v1541 = vpack.c.b16 %v1509, %v1509
    %v1542 = vpack.c.b16 %v1510, %v1510
    %v1543 = vpack.c.b16 %v1511, %v1511
    %v1544 = vpack.c.b16 %v1512, %v1512
    %v1545 = vpack.c.b16 %v1513, %v1513
    %v1546 = vpack.c.b16 %v1514, %v1514
    %v1547 = vpack.c.b16 %v1515, %v1515
    %v1548 = vpack.c.b16 %v1516, %v1516
    %v1549 = vpack.c.b16 %v1517, %v1517
    %v1550 = vpack.c.b16 %v1518, %v1518
    %v1551 = vpack.c.b16 %v1519, %v1519
    %v1552 = vpack.c.b16 %v1520, %v1520
    %v1553 = vpack.c.b16 %v1521, %v1521
    %v1554 = vpack.c.b16 %v1522, %v1522
    %v1555 = vpack.c.b16 %v1523, %v1523
    %v1556 = vpack.c.b16 %v1524, %v1524
    %v1557 = vpack.c.b16 %v1525, %v1525
    %v1558 = vpack.c.b16 %v1526, %v1526
    %v1559 = vpack.c.b16 %v1527, %v1527
    %1592 = vst [vmem:[#allocation2] sm:$0xf] %v1528
    %1593 = vst [vmem:[#allocation2 + $0x4] sm:$0xf] %v1529
    %1594 = vst [vmem:[#allocation2 + $0x8] sm:$0xf] %v1530
    %1595 = vst [vmem:[#allocation2 + $0xc] sm:$0xf] %v1531
    %1596 = vst [vmem:[#allocation2 + $0x10] sm:$0xf] %v1532
    %1597 = vst [vmem:[#allocation2 + $0x14] sm:$0xf] %v1533
    %1598 = vst [vmem:[#allocation2 + $0x18] sm:$0xf] %v1534
    %1599 = vst [vmem:[#allocation2 + $0x1c] sm:$0xf] %v1535
    %1600 = vst [vmem:[#allocation2 + $0x20] sm:$0xf] %v1536
    %1601 = vst [vmem:[#allocation2 + $0x24] sm:$0xf] %v1537
    %1602 = vst [vmem:[#allocation2 + $0x28] sm:$0xf] %v1538
    %1603 = vst [vmem:[#allocation2 + $0x2c] sm:$0xf] %v1539
    %1604 = vst [vmem:[#allocation2 + $0x30] sm:$0xf] %v1540
    %1605 = vst [vmem:[#allocation2 + $0x34] sm:$0xf] %v1541
    %1606 = vst [vmem:[#allocation2 + $0x38] sm:$0xf] %v1542
    %1607 = vst [vmem:[#allocation2 + $0x3c] sm:$0xf] %v1543
    %1608 = vst [vmem:[#allocation2 + $0x40] sm:$0xf] %v1544
    %1609 = vst [vmem:[#allocation2 + $0x44] sm:$0xf] %v1545
    %1610 = vst [vmem:[#allocation2 + $0x48] sm:$0xf] %v1546
    %1611 = vst [vmem:[#allocation2 + $0x4c] sm:$0xf] %v1547
    %1612 = vst [vmem:[#allocation2 + $0x50] sm:$0xf] %v1548
    %1613 = vst [vmem:[#allocation2 + $0x54] sm:$0xf] %v1549
    %1614 = vst [vmem:[#allocation2 + $0x58] sm:$0xf] %v1550
    %1615 = vst [vmem:[#allocation2 + $0x5c] sm:$0xf] %v1551
    %1616 = vst [vmem:[#allocation2 + $0x60] sm:$0xf] %v1552
    %1617 = vst [vmem:[#allocation2 + $0x64] sm:$0xf] %v1553
    %1618 = vst [vmem:[#allocation2 + $0x68] sm:$0xf] %v1554
    %1619 = vst [vmem:[#allocation2 + $0x6c] sm:$0xf] %v1555
    %1620 = vst [vmem:[#allocation2 + $0x70] sm:$0xf] %v1556
    %1621 = vst [vmem:[#allocation2 + $0x74] sm:$0xf] %v1557
    %1622 = vst [vmem:[#allocation2 + $0x78] sm:$0xf] %v1558
    %1623 = vst [vmem:[#allocation2 + $0x7c] sm:$0xf] %v1559
    %v1624 = vld [vmem:[%s6] sm:$0xff]
    %v1625 = vld [vmem:[%s6 + $0x8] sm:$0xff]
    %v1626 = vld [vmem:[%s6 + $0x10] sm:$0xff]
    %v1627 = vld [vmem:[%s6 + $0x18] sm:$0xff]
    %1628 = vmatprep.subr.mxu0 0.0
    %1629 = vmatpush1.msra.mxu0 0.0
    %1630 = vmatprep.subr.mxu0 0.0
    %1631 = vmatpush1.msra.mxu0 0.0
    %1632 = vmatprep.subr.mxu0 0.0
    %1633 = vmatpush1.msra.mxu0 0.0
    %1634 = vmatprep.subr.mxu0 0.0
    %1635 = vmatpush1.msra.mxu0 0.0
    %1636 = vmatprep.subr.mxu0 0.0
    %1637 = vmatpush1.msra.mxu0 0.0
    %1638 = vmatprep.subr.mxu0 0.0
    %1639 = vmatpush1.msra.mxu0 0.0
    %1640 = vmatprep.subr.mxu0 0.0
    %1641 = vmatpush1.msra.mxu0 0.0
    %1642 = vmatprep.subr.mxu0 0.0
    %1643 = vmatpush1.msra.mxu0 0.0
    %1644 = vmatprep.subr.mxu0 0.0
    %1645 = vmatpush1.msra.mxu0 0.0
    %1646 = vmatprep.subr.mxu0 0.0
    %1647 = vmatpush1.msra.mxu0 0.0
    %1648 = vmatprep.subr.mxu0 0.0
    %1649 = vmatpush1.msra.mxu0 0.0
    %1650 = vmatprep.subr.mxu0 0.0
    %1651 = vmatpush1.msra.mxu0 0.0
    %1652 = vmatprep.subr.mxu0 0.0
    %1653 = vmatpush1.msra.mxu0 %v1627
    %1654 = vmatprep.subr.mxu0 0.0
    %1655 = vmatpush1.msra.mxu0 %v1626
    %1656 = vmatprep.subr.mxu0 0.0
    %1657 = vmatpush1.msra.mxu0 %v1625
    %1658 = vmatprep.subr.mxu0 0.0
    %1659 = vmatpush1.msra.mxu0 %v1624
    %1660 = vmatprep.subr.mxu0 0.0
    %1661 = vmatpush2.msra.mxu0 0.0
    %1662 = vmatprep.subr.mxu0 0.0
    %1663 = vmatpush2.msra.mxu0 0.0
    %1664 = vmatprep.subr.mxu0 0.0
    %1665 = vmatpush2.msra.mxu0 0.0
    %1666 = vmatprep.subr.mxu0 0.0
    %1667 = vmatpush2.msra.mxu0 0.0
    %1668 = vmatprep.subr.mxu0 0.0
    %1669 = vmatpush2.msra.mxu0 0.0
    %1670 = vmatprep.subr.mxu0 0.0
    %1671 = vmatpush2.msra.mxu0 0.0
    %1672 = vmatprep.subr.mxu0 0.0
    %1673 = vmatpush2.msra.mxu0 0.0
    %1674 = vmatprep.subr.mxu0 0.0
    %1675 = vmatpush2.msra.mxu0 0.0
    %1676 = vmatprep.subr.mxu0 0.0
    %1677 = vmatpush2.msra.mxu0 0.0
    %1678 = vmatprep.subr.mxu0 0.0
    %1679 = vmatpush2.msra.mxu0 0.0
    %1680 = vmatprep.subr.mxu0 0.0
    %1681 = vmatpush2.msra.mxu0 0.0
    %1682 = vmatprep.subr.mxu0 0.0
    %1683 = vmatpush2.msra.mxu0 0.0
    %1684 = vmatprep.subr.mxu0 0.0
    %1685 = vmatpush2.msra.mxu0 0.0
    %1686 = vmatprep.subr.mxu0 0.0
    %1687 = vmatpush2.msra.mxu0 0.0
    %1688 = vmatprep.subr.mxu0 0.0
    %1689 = vmatpush2.msra.mxu0 0.0
    %1690 = vmatprep.subr.mxu0 0.0
    %1691 = vmatpush2.msra.mxu0 0.0
    %1692 = vmatprep.mubr.f32.mxu0 0.0
    %1693 = vmatmul.mubr.f32.gmra.mxu0 %v1144
    %v1694 = vpop.f32.mrf.mxu0
    %v1695 = vadd.f32 0.0, %v1694
    %v1696 = vpop.f32.mrf.mxu0
    %1697 = vmatprep.mubr.f32.mxu0 0.0
    %1698 = vmatmul.mubr.f32.gmra.mxu0 %v1147
    %v1699 = vpop.f32.mrf.mxu0
    %v1700 = vadd.f32 0.0, %v1699
    %v1701 = vpop.f32.mrf.mxu0
    %1702 = vmatprep.mubr.f32.mxu0 0.0
    %1703 = vmatmul.mubr.f32.gmra.mxu0 %v1150
    %v1704 = vpop.f32.mrf.mxu0
    %v1705 = vadd.f32 0.0, %v1704
    %v1706 = vpop.f32.mrf.mxu0
    %1707 = vmatprep.mubr.f32.mxu0 0.0
    %1708 = vmatmul.mubr.f32.gmra.mxu0 %v1153
    %v1709 = vpop.f32.mrf.mxu0
    %v1710 = vadd.f32 0.0, %v1709
    %v1711 = vpop.f32.mrf.mxu0
    %1712 = vmatprep.mubr.f32.mxu0 0.0
    %1713 = vmatmul.mubr.f32.gmra.mxu0 %v1156
    %v1714 = vpop.f32.mrf.mxu0
    %v1715 = vadd.f32 0.0, %v1714
    %v1716 = vpop.f32.mrf.mxu0
    %1717 = vmatprep.mubr.f32.mxu0 0.0
    %1718 = vmatmul.mubr.f32.gmra.mxu0 %v1159
    %v1719 = vpop.f32.mrf.mxu0
    %v1720 = vadd.f32 0.0, %v1719
    %v1721 = vpop.f32.mrf.mxu0
    %1722 = vmatprep.mubr.f32.mxu0 0.0
    %1723 = vmatmul.mubr.f32.gmra.mxu0 %v1162
    %v1724 = vpop.f32.mrf.mxu0
    %v1725 = vadd.f32 0.0, %v1724
    %v1726 = vpop.f32.mrf.mxu0
    %1727 = vmatprep.mubr.f32.mxu0 0.0
    %1728 = vmatmul.mubr.f32.gmra.mxu0 %v1165
    %v1729 = vpop.f32.mrf.mxu0
    %v1730 = vadd.f32 0.0, %v1729
    %v1731 = vpop.f32.mrf.mxu0
    %1732 = vmatprep.mubr.f32.mxu0 0.0
    %1733 = vmatmul.mubr.f32.gmra.mxu0 %v1168
    %v1734 = vpop.f32.mrf.mxu0
    %v1735 = vadd.f32 0.0, %v1734
    %v1736 = vpop.f32.mrf.mxu0
    %1737 = vmatprep.mubr.f32.mxu0 0.0
    %1738 = vmatmul.mubr.f32.gmra.mxu0 %v1171
    %v1739 = vpop.f32.mrf.mxu0
    %v1740 = vadd.f32 0.0, %v1739
    %v1741 = vpop.f32.mrf.mxu0
    %1742 = vmatprep.mubr.f32.mxu0 0.0
    %1743 = vmatmul.mubr.f32.gmra.mxu0 %v1174
    %v1744 = vpop.f32.mrf.mxu0
    %v1745 = vadd.f32 0.0, %v1744
    %v1746 = vpop.f32.mrf.mxu0
    %1747 = vmatprep.mubr.f32.mxu0 0.0
    %1748 = vmatmul.mubr.f32.gmra.mxu0 %v1177
    %v1749 = vpop.f32.mrf.mxu0
    %v1750 = vadd.f32 0.0, %v1749
    %v1751 = vpop.f32.mrf.mxu0
    %1752 = vmatprep.mubr.f32.mxu0 0.0
    %1753 = vmatmul.mubr.f32.gmra.mxu0 %v1180
    %v1754 = vpop.f32.mrf.mxu0
    %v1755 = vadd.f32 0.0, %v1754
    %v1756 = vpop.f32.mrf.mxu0
    %1757 = vmatprep.mubr.f32.mxu0 0.0
    %1758 = vmatmul.mubr.f32.gmra.mxu0 %v1183
    %v1759 = vpop.f32.mrf.mxu0
    %v1760 = vadd.f32 0.0, %v1759
    %v1761 = vpop.f32.mrf.mxu0
    %1762 = vmatprep.mubr.f32.mxu0 0.0
    %1763 = vmatmul.mubr.f32.gmra.mxu0 %v1186
    %v1764 = vpop.f32.mrf.mxu0
    %v1765 = vadd.f32 0.0, %v1764
    %v1766 = vpop.f32.mrf.mxu0
    %1767 = vmatprep.mubr.f32.mxu0 0.0
    %1768 = vmatmul.mubr.f32.gmra.mxu0 %v1189
    %v1769 = vpop.f32.mrf.mxu0
    %v1770 = vadd.f32 0.0, %v1769
    %v1771 = vpop.f32.mrf.mxu0
    %1772 = vmatprep.mubr.f32.mxu0 0.0
    %1773 = vmatmul.mubr.f32.gmra.mxu0 %v1192
    %v1774 = vpop.f32.mrf.mxu0
    %v1775 = vadd.f32 0.0, %v1774
    %v1776 = vpop.f32.mrf.mxu0
    %1777 = vmatprep.mubr.f32.mxu0 0.0
    %1778 = vmatmul.mubr.f32.gmra.mxu0 %v1195
    %v1779 = vpop.f32.mrf.mxu0
    %v1780 = vadd.f32 0.0, %v1779
    %v1781 = vpop.f32.mrf.mxu0
    %1782 = vmatprep.mubr.f32.mxu0 0.0
    %1783 = vmatmul.mubr.f32.gmra.mxu0 %v1198
    %v1784 = vpop.f32.mrf.mxu0
    %v1785 = vadd.f32 0.0, %v1784
    %v1786 = vpop.f32.mrf.mxu0
    %1787 = vmatprep.mubr.f32.mxu0 0.0
    %1788 = vmatmul.mubr.f32.gmra.mxu0 %v1201
    %v1789 = vpop.f32.mrf.mxu0
    %v1790 = vadd.f32 0.0, %v1789
    %v1791 = vpop.f32.mrf.mxu0
    %1792 = vmatprep.mubr.f32.mxu0 0.0
    %1793 = vmatmul.mubr.f32.gmra.mxu0 %v1204
    %v1794 = vpop.f32.mrf.mxu0
    %v1795 = vadd.f32 0.0, %v1794
    %v1796 = vpop.f32.mrf.mxu0
    %1797 = vmatprep.mubr.f32.mxu0 0.0
    %1798 = vmatmul.mubr.f32.gmra.mxu0 %v1207
    %v1799 = vpop.f32.mrf.mxu0
    %v1800 = vadd.f32 0.0, %v1799
    %v1801 = vpop.f32.mrf.mxu0
    %1802 = vmatprep.mubr.f32.mxu0 0.0
    %1803 = vmatmul.mubr.f32.gmra.mxu0 %v1210
    %v1804 = vpop.f32.mrf.mxu0
    %v1805 = vadd.f32 0.0, %v1804
    %v1806 = vpop.f32.mrf.mxu0
    %1807 = vmatprep.mubr.f32.mxu0 0.0
    %1808 = vmatmul.mubr.f32.gmra.mxu0 %v1213
    %v1809 = vpop.f32.mrf.mxu0
    %v1810 = vadd.f32 0.0, %v1809
    %v1811 = vpop.f32.mrf.mxu0
    %1812 = vmatprep.mubr.f32.mxu0 0.0
    %1813 = vmatmul.mubr.f32.gmra.mxu0 %v1216
    %v1814 = vpop.f32.mrf.mxu0
    %v1815 = vadd.f32 0.0, %v1814
    %v1816 = vpop.f32.mrf.mxu0
    %1817 = vmatprep.mubr.f32.mxu0 0.0
    %1818 = vmatmul.mubr.f32.gmra.mxu0 %v1219
    %v1819 = vpop.f32.mrf.mxu0
    %v1820 = vadd.f32 0.0, %v1819
    %v1821 = vpop.f32.mrf.mxu0
    %1822 = vmatprep.mubr.f32.mxu0 0.0
    %1823 = vmatmul.mubr.f32.gmra.mxu0 %v1222
    %v1824 = vpop.f32.mrf.mxu0
    %v1825 = vadd.f32 0.0, %v1824
    %v1826 = vpop.f32.mrf.mxu0
    %1827 = vmatprep.mubr.f32.mxu0 0.0
    %1828 = vmatmul.mubr.f32.gmra.mxu0 %v1225
    %v1829 = vpop.f32.mrf.mxu0
    %v1830 = vadd.f32 0.0, %v1829
    %v1831 = vpop.f32.mrf.mxu0
    %1832 = vmatprep.mubr.f32.mxu0 0.0
    %1833 = vmatmul.mubr.f32.gmra.mxu0 %v1228
    %v1834 = vpop.f32.mrf.mxu0
    %v1835 = vadd.f32 0.0, %v1834
    %v1836 = vpop.f32.mrf.mxu0
    %1837 = vmatprep.mubr.f32.mxu0 0.0
    %1838 = vmatmul.mubr.f32.gmra.mxu0 %v1231
    %v1839 = vpop.f32.mrf.mxu0
    %v1840 = vadd.f32 0.0, %v1839
    %v1841 = vpop.f32.mrf.mxu0
    %1842 = vmatprep.mubr.f32.mxu0 0.0
    %1843 = vmatmul.mubr.f32.gmra.mxu0 %v1234
    %v1844 = vpop.f32.mrf.mxu0
    %v1845 = vadd.f32 0.0, %v1844
    %v1846 = vpop.f32.mrf.mxu0
    %1847 = vmatprep.mubr.f32.mxu0 0.0
    %1848 = vmatmul.mubr.f32.gmra.mxu0 %v1237
    %v1849 = vpop.f32.mrf.mxu0
    %v1850 = vadd.f32 0.0, %v1849
    %v1851 = vpop.f32.mrf.mxu0
    %1852 = vdwg.mxu0
    %vm1853 = vcmask 64512
    %1854 = vst.msk [vmem:[%s8] sm:$0xff] %vm1853, %v1695
    %1855 = vst.msk [vmem:[%s8 + $0x8] sm:$0xff] %vm1853, %v1700
    %1856 = vst.msk [vmem:[%s8 + $0x10] sm:$0xff] %vm1853, %v1705
    %1857 = vst.msk [vmem:[%s8 + $0x18] sm:$0xff] %vm1853, %v1710
    %1858 = vst.msk [vmem:[%s8 + $0x20] sm:$0xff] %vm1853, %v1715
    %1859 = vst.msk [vmem:[%s8 + $0x28] sm:$0xff] %vm1853, %v1720
    %1860 = vst.msk [vmem:[%s8 + $0x30] sm:$0xff] %vm1853, %v1725
    %1861 = vst.msk [vmem:[%s8 + $0x38] sm:$0xff] %vm1853, %v1730
    %1862 = vst.msk [vmem:[%s8 + $0x40] sm:$0xff] %vm1853, %v1735
    %1863 = vst.msk [vmem:[%s8 + $0x48] sm:$0xff] %vm1853, %v1740
    %1864 = vst.msk [vmem:[%s8 + $0x50] sm:$0xff] %vm1853, %v1745
    %1865 = vst.msk [vmem:[%s8 + $0x58] sm:$0xff] %vm1853, %v1750
    %1866 = vst.msk [vmem:[%s8 + $0x60] sm:$0xff] %vm1853, %v1755
    %1867 = vst.msk [vmem:[%s8 + $0x68] sm:$0xff] %vm1853, %v1760
    %1868 = vst.msk [vmem:[%s8 + $0x70] sm:$0xff] %vm1853, %v1765
    %1869 = vst.msk [vmem:[%s8 + $0x78] sm:$0xff] %vm1853, %v1770
    %1870 = vst.msk [vmem:[%s8 + $0x80] sm:$0xff] %vm1853, %v1775
    %1871 = vst.msk [vmem:[%s8 + $0x88] sm:$0xff] %vm1853, %v1780
    %1872 = vst.msk [vmem:[%s8 + $0x90] sm:$0xff] %vm1853, %v1785
    %1873 = vst.msk [vmem:[%s8 + $0x98] sm:$0xff] %vm1853, %v1790
    %1874 = vst.msk [vmem:[%s8 + $0xa0] sm:$0xff] %vm1853, %v1795
    %1875 = vst.msk [vmem:[%s8 + $0xa8] sm:$0xff] %vm1853, %v1800
    %1876 = vst.msk [vmem:[%s8 + $0xb0] sm:$0xff] %vm1853, %v1805
    %1877 = vst.msk [vmem:[%s8 + $0xb8] sm:$0xff] %vm1853, %v1810
    %1878 = vst.msk [vmem:[%s8 + $0xc0] sm:$0xff] %vm1853, %v1815
    %1879 = vst.msk [vmem:[%s8 + $0xc8] sm:$0xff] %vm1853, %v1820
    %1880 = vst.msk [vmem:[%s8 + $0xd0] sm:$0xff] %vm1853, %v1825
    %1881 = vst.msk [vmem:[%s8 + $0xd8] sm:$0xff] %vm1853, %v1830
    %1882 = vst.msk [vmem:[%s8 + $0xe0] sm:$0xff] %vm1853, %v1835
    %1883 = vst.msk [vmem:[%s8 + $0xe8] sm:$0xff] %vm1853, %v1840
    %1884 = vst.msk [vmem:[%s8 + $0xf0] sm:$0xff] %vm1853, %v1845
    %1885 = vst.msk [vmem:[%s8 + $0xf8] sm:$0xff] %vm1853, %v1850
    // Predicated region
    $region30: #{tpu_custom_call.1} parent=1 // pred_check
      _
    $region31: #{tpu_custom_call.1} parent=1 // pred_check_branch
      %1887 = sbr.rel (0) target = $region33
    $region32: #{tpu_custom_call.1} parent=1 // pred_region
      %s1889 = ssub.s32 2048, 2048
      %1890 = vsyncadd [#allocation3], %s1889
      %s1891 = sshll.u32 [#allocation2], 4
      %s1892 = int_to_ptr.vmem [resolvable:$true] %s1891
      %1897 = dma.vmem_to_hbm [thread:$0]  %s1892, 2048, %s7, [#allocation3], 64, 64, 4
    $region33: #{tpu_custom_call.1} parent=1 // pred_fallthru
      _
    // Predicated region
    $region34: #{tpu_custom_call.1} parent=1 // pred_check
      _
    $region35: #{tpu_custom_call.1} parent=1 // pred_check_branch
      %1899 = sbr.rel (0) target = $region37
    $region36: #{tpu_custom_call.1} parent=1 // pred_region
      _
    $region37: #{tpu_custom_call.1} parent=1 // pred_fallthru
      _
    // Predicated region
    $region38: #{tpu_custom_call.1} parent=1 // pred_check
      _
    $region39: #{tpu_custom_call.1} parent=1 // pred_check_branch
      %1901 = sbr.rel (0) target = $region41
    $region40: #{tpu_custom_call.1} parent=1 // pred_region
      %1902 = dma.done [#allocation3], 2048
    $region41: #{tpu_custom_call.1} parent=1 // pred_fallthru
      _
    // Predicated region
    $region42: #{tpu_custom_call.1} parent=1 // pred_check
      _
    $region43: #{tpu_custom_call.1} parent=1 // pred_check_branch
      %1904 = sbr.rel (0) target = $region45
    $region44: #{tpu_custom_call.1} parent=1 // pred_region
      _
    $region45: #{tpu_custom_call.1} parent=1 // pred_fallthru
      _
    %1905 = vsyncpa [#allocation3], 1

</llo_original>
